<compile_context>
chip_gen: v6e
topology: v6e:2x2x1
jax: 0.10.0
libtpu: 0.0.40
codegen_flags: <defaults>
</compile_context>

<pallas_src>
import jax
import jax.numpy as jnp
from jax.experimental import pallas as pl
from jax.experimental.pallas import tpu as pltpu


def _round_up(x, m):
    return (x + m - 1) // m * m


def _noisy_mlp1_kernel(x_ref, w1_ref, b1_ref, w2_ref, b2_ref, w3_ref, b3_ref,
                       o_ref):
    # Layer 1: cast the f32 activation tile to bf16 in-kernel, bf16 MXU matmul
    # with f32 accumulation, f32 bias add + ReLU.
    x = x_ref[...].astype(jnp.bfloat16)
    h = jnp.dot(x, w1_ref[...], preferred_element_type=jnp.float32)
    h = jnp.maximum(h + b1_ref[...], 0.0).astype(jnp.bfloat16)
    # Layer 2
    h = jnp.dot(h, w2_ref[...], preferred_element_type=jnp.float32)
    h = jnp.maximum(h + b2_ref[...], 0.0).astype(jnp.bfloat16)
    # Output layer (no activation); padded lanes carry zero weights/bias.
    out = jnp.dot(h, w3_ref[...], preferred_element_type=jnp.float32)
    o_ref[...] = (out + b3_ref[...]).astype(o_ref.dtype)


def prepare_params(params):
    """One-time param prep: cast weights to bf16 and pad feature dims to 128.

    Call once at init / checkpoint-load time, not per forward.
    Returns (w1p, b1p, w2p, b2p, w3p, b3p) with shapes
      (D, H1p), (1, H1p), (H1p, H2p), (1, H2p), (H2p, NCp), (1, NCp).
    """
    w1, b1, w2, b2, w3, b3 = params
    d_in = w1.shape[0]
    h1 = _round_up(w1.shape[1], 128)   # 300 -> 384 (deliberately not 512)
    h2 = _round_up(w2.shape[1], 128)   # 100 -> 128
    nc = _round_up(w3.shape[1], 128)   # 10  -> 128

    def pad_w(w, rows, cols):
        return jnp.pad(w.astype(jnp.bfloat16),
                       ((0, rows - w.shape[0]), (0, cols - w.shape[1])))

    def pad_b(v, cols):
        return jnp.pad(v.astype(jnp.float32), ((0, 0), (0, cols - v.shape[1])))

    return (pad_w(w1, d_in, h1), pad_b(b1, h1),
            pad_w(w2, h1, h2), pad_b(b2, h2),
            pad_w(w3, h2, nc), pad_b(b3, nc))


def noisy_mlp1_forward(x, prepared, n_cls, *, tb=None):
    """x: (B, ...) f32 (flattened to (B, D)).  Returns f32 logits (B, n_cls)."""
    w1p, b1p, w2p, b2p, w3p, b3p = prepared
    b = x.shape[0]
    x2d = x.reshape(b, -1)                       # torch x.view(B, -1); no copy pass
    d_in = x2d.shape[1]
    assert d_in == w1p.shape[0], "input_dim mismatch with prepared params"
    h1, h2, nc = w1p.shape[1], w2p.shape[1], w3p.shape[1]

    # Batch tile: multiple of 8 sublanes, ~B/2 (so grid has >=2 programs for
    # v7x's two TensorCores), capped at 512 rows.
    if tb is None:
        tb = min(512, max(8, _round_up(pl.cdiv(b, 2), 8)))
    grid = (pl.cdiv(b, tb),)                     # ragged last block is masked

    const = lambda shape: pl.BlockSpec(shape, lambda i: (0, 0))

    flops = 2 * b * (d_in * h1 + h1 * h2 + h2 * nc)
    bytes_accessed = (x2d.size * 4
                      + (w1p.size + w2p.size + w3p.size) * 2
                      + (b1p.size + b2p.size + b3p.size) * 4
                      + b * nc * 4)

    out = pl.pallas_call(
        _noisy_mlp1_kernel,
        out_shape=jax.ShapeDtypeStruct((b, nc), jnp.float32),
        grid_spec=pltpu.PrefetchScalarGridSpec(
            num_scalar_prefetch=0,
            grid=grid,
            in_specs=[
                # x: batch-tiled f32, double-buffered by the Pallas pipeline.
                pl.BlockSpec((tb, d_in), lambda i: (i, 0)),
                # weights / biases: VMEM-resident across the whole grid.
                const((d_in, h1)), const((1, h1)),
                const((h1, h2)), const((1, h2)),
                const((h2, nc)), const((1, nc)),
            ],
            out_specs=pl.BlockSpec((tb, nc), lambda i: (i, 0)),
        ),
        compiler_params=pltpu.CompilerParams(
            dimension_semantics=("parallel",),   # shards batch across v7x TCs
            vmem_limit_bytes=32 << 20,
        ),
        cost_estimate=pl.CostEstimate(
            flops=flops, transcendentals=0, bytes_accessed=bytes_accessed),
    )(x2d, w1p, b1p, w2p, b2p, w3p, b3p)

    return out[:, :n_cls]


def init_params(key, input_dim, n_cls, layer_dims=(300, 100)):
    """Deterministic init matching the module's parameter shapes.

    PyTorch nn.Linear weight is (out, in); we store the transpose (in, out)
    so the kernel does x @ W directly.
    """
    dims = [input_dim] + list(layer_dims) + [n_cls]
    params = []
    for i in range(len(dims) - 1):
        fan_in, fan_out = dims[i], dims[i + 1]
        key, kw, kb = jax.random.split(key, 3)
        bound = 1.0 / (fan_in ** 0.5)    # torch.nn.Linear default init range
        w = jax.random.uniform(kw, (fan_in, fan_out), jnp.float32, -bound, bound)
        bvec = jax.random.uniform(kb, (1, fan_out), jnp.float32, -bound, bound)
        params += [w, bvec]
    return tuple(params)


def _reference_forward_bf16(x, params):
    """Pure-JAX reference mirroring the kernel's bf16/f32-accumulate numerics."""
    b = x.shape[0]
    h = x.reshape(b, -1).astype(jnp.bfloat16)
    w1, b1, w2, b2, w3, b3 = params
    h = jnp.maximum(jnp.dot(h, w1.astype(jnp.bfloat16),
                            preferred_element_type=jnp.float32) + b1, 0.0)
    h = h.astype(jnp.bfloat16)
    h = jnp.maximum(jnp.dot(h, w2.astype(jnp.bfloat16),
                            preferred_element_type=jnp.float32) + b2, 0.0)
    h = h.astype(jnp.bfloat16)
    return jnp.dot(h, w3.astype(jnp.bfloat16),
                   preferred_element_type=jnp.float32) + b3


if __name__ == "__main__":
    key = jax.random.PRNGKey(0)
    kx, kp = jax.random.split(key)

    # Small shapes consistent with the module: image-like input flattened.
    B, C, H, W = 2, 4, 16, 16
    input_dim = C * H * W          # 1024
    n_cls = 10
    layer_dims = (300, 100)        # module default

    x = jax.random.normal(kx, (B, C, H, W), jnp.float32)
    params = init_params(kp, input_dim, n_cls, layer_dims)
    prepared = prepare_params(params)          # one-time param prep (hoisted)

    out = noisy_mlp1_forward(x, prepared, n_cls)
    out = jax.block_until_ready(out)

    ref = _reference_forward_bf16(x, params)
    assert out.shape == (B, n_cls)
    assert jnp.allclose(out, ref, atol=1e-2, rtol=1e-2)

    print("KERNEL_OK")
</pallas_src>

<mosaic_0001>
module attributes {stable_mosaic.version = 11 : i64} {
  func.func @_noisy_mlp1_kernel(%arg0: i32, %arg1: memref<8x1024xf32, #tpu.memory_space<vmem>>, %arg2: memref<1024x384xbf16, #tpu.memory_space<vmem>>, %arg3: memref<1x384xf32, #tpu.memory_space<vmem>>, %arg4: memref<384x128xbf16, #tpu.memory_space<vmem>>, %arg5: memref<1x128xf32, #tpu.memory_space<vmem>>, %arg6: memref<128x128xbf16, #tpu.memory_space<vmem>>, %arg7: memref<1x128xf32, #tpu.memory_space<vmem>>, %arg8: memref<8x128xf32, #tpu.memory_space<vmem>>) attributes {dimension_semantics = [#tpu.dimension_semantics<parallel>], iteration_bounds = array<i64: 1>, scalar_prefetch = 0 : i64, scratch_operands = 0 : i64, tpu.core_type = #tpu.core_type<tc>, window_params = [{transform_indices = @transform_0, window_bounds = array<i64: 8, 1024>}, {pipeline_mode = #tpu.pipeline_mode<synchronous>, transform_indices = @transform_1, window_bounds = array<i64: 1024, 384>}, {pipeline_mode = #tpu.pipeline_mode<synchronous>, transform_indices = @transform_2, window_bounds = array<i64: 1, 384>}, {pipeline_mode = #tpu.pipeline_mode<synchronous>, transform_indices = @transform_3, window_bounds = array<i64: 384, 128>}, {pipeline_mode = #tpu.pipeline_mode<synchronous>, transform_indices = @transform_4, window_bounds = array<i64: 1, 128>}, {pipeline_mode = #tpu.pipeline_mode<synchronous>, transform_indices = @transform_5, window_bounds = array<i64: 128, 128>}, {pipeline_mode = #tpu.pipeline_mode<synchronous>, transform_indices = @transform_6, window_bounds = array<i64: 1, 128>}, {transform_indices = @transform_7, window_bounds = array<i64: 8, 128>}]} {
    %c0 = arith.constant 0 : index
    %c0_0 = arith.constant 0 : index
    %0 = vector.load %arg1[%c0, %c0_0] : memref<8x1024xf32, #tpu.memory_space<vmem>>, vector<8x1024xf32>
    %1 = arith.truncf %0 : vector<8x1024xf32> to vector<8x1024xbf16>
    %c0_1 = arith.constant 0 : index
    %c0_2 = arith.constant 0 : index
    %2 = vector.load %arg2[%c0_1, %c0_2] : memref<1024x384xbf16, #tpu.memory_space<vmem>>, vector<1024x384xbf16>
    %cst = arith.constant dense<0.000000e+00> : vector<8x384xf32>
    %3 = tpu.matmul %1, %2, %cst {dimension_numbers = #tpu.dot_dimension_numbers<[1], [0], [0], [1], [0, 0, 1, 1], [], []>} : vector<8x1024xbf16>, vector<1024x384xbf16>, vector<8x384xf32> -> vector<8x384xf32>
    %c0_3 = arith.constant 0 : index
    %c0_4 = arith.constant 0 : index
    %4 = vector.load %arg3[%c0_3, %c0_4] : memref<1x384xf32, #tpu.memory_space<vmem>>, vector<1x384xf32>
    %5 = vector.broadcast %4 : vector<1x384xf32> to vector<8x384xf32>
    %6 = arith.addf %3, %5 : vector<8x384xf32>
    %cst_5 = arith.constant 0.000000e+00 : f32
    %7 = vector.broadcast %cst_5 : f32 to vector<8x384xf32>
    %8 = arith.maximumf %6, %7 : vector<8x384xf32>
    %9 = arith.truncf %8 : vector<8x384xf32> to vector<8x384xbf16>
    %c0_6 = arith.constant 0 : index
    %c0_7 = arith.constant 0 : index
    %10 = vector.load %arg4[%c0_6, %c0_7] : memref<384x128xbf16, #tpu.memory_space<vmem>>, vector<384x128xbf16>
    %cst_8 = arith.constant dense<0.000000e+00> : vector<8x128xf32>
    %11 = tpu.matmul %9, %10, %cst_8 {dimension_numbers = #tpu.dot_dimension_numbers<[1], [0], [0], [1], [0, 0, 1, 1], [], []>} : vector<8x384xbf16>, vector<384x128xbf16>, vector<8x128xf32> -> vector<8x128xf32>
    %c0_9 = arith.constant 0 : index
    %c0_10 = arith.constant 0 : index
    %12 = vector.load %arg5[%c0_9, %c0_10] : memref<1x128xf32, #tpu.memory_space<vmem>>, vector<1x128xf32>
    %13 = vector.broadcast %12 : vector<1x128xf32> to vector<8x128xf32>
    %14 = arith.addf %11, %13 : vector<8x128xf32>
    %cst_11 = arith.constant 0.000000e+00 : f32
    %15 = vector.broadcast %cst_11 : f32 to vector<8x128xf32>
    %16 = arith.maximumf %14, %15 : vector<8x128xf32>
    %17 = arith.truncf %16 : vector<8x128xf32> to vector<8x128xbf16>
    %c0_12 = arith.constant 0 : index
    %c0_13 = arith.constant 0 : index
    %18 = vector.load %arg6[%c0_12, %c0_13] : memref<128x128xbf16, #tpu.memory_space<vmem>>, vector<128x128xbf16>
    %cst_14 = arith.constant dense<0.000000e+00> : vector<8x128xf32>
    %19 = tpu.matmul %17, %18, %cst_14 {dimension_numbers = #tpu.dot_dimension_numbers<[1], [0], [0], [1], [0, 0, 1, 1], [], []>} : vector<8x128xbf16>, vector<128x128xbf16>, vector<8x128xf32> -> vector<8x128xf32>
    %c0_15 = arith.constant 0 : index
    %c0_16 = arith.constant 0 : index
    %20 = vector.load %arg7[%c0_15, %c0_16] : memref<1x128xf32, #tpu.memory_space<vmem>>, vector<1x128xf32>
    %21 = vector.broadcast %20 : vector<1x128xf32> to vector<8x128xf32>
    %22 = arith.addf %19, %21 : vector<8x128xf32>
    %c0_17 = arith.constant 0 : index
    %c0_18 = arith.constant 0 : index
    %23 = vector.load %arg8[%c0_17, %c0_18] : memref<8x128xf32, #tpu.memory_space<vmem>>, vector<8x128xf32>
    tpu.vector_store %arg8[%c0_17, %c0_18], %22 {strides = array<i32>} : memref<8x128xf32, #tpu.memory_space<vmem>>, vector<8x128xf32>,
    return
  }
  func.func @transform_0(%arg0: i32) -> (i32, i32) {
    %c0_i32 = arith.constant 0 : i32
    %c0_i32_0 = arith.constant 0 : i32
    return %arg0, %c0_i32 : i32, i32
  }
  func.func @transform_1(%arg0: i32) -> (i32, i32) {
    %c0_i32 = arith.constant 0 : i32
    %c0_i32_0 = arith.constant 0 : i32
    %c0_i32_1 = arith.constant 0 : i32
    return %c0_i32, %c0_i32_0 : i32, i32
  }
  func.func @transform_2(%arg0: i32) -> (i32, i32) {
    %c0_i32 = arith.constant 0 : i32
    %c0_i32_0 = arith.constant 0 : i32
    %c0_i32_1 = arith.constant 0 : i32
    return %c0_i32, %c0_i32_0 : i32, i32
  }
  func.func @transform_3(%arg0: i32) -> (i32, i32) {
    %c0_i32 = arith.constant 0 : i32
    %c0_i32_0 = arith.constant 0 : i32
    %c0_i32_1 = arith.constant 0 : i32
    return %c0_i32, %c0_i32_0 : i32, i32
  }
  func.func @transform_4(%arg0: i32) -> (i32, i32) {
    %c0_i32 = arith.constant 0 : i32
    %c0_i32_0 = arith.constant 0 : i32
    %c0_i32_1 = arith.constant 0 : i32
    return %c0_i32, %c0_i32_0 : i32, i32
  }
  func.func @transform_5(%arg0: i32) -> (i32, i32) {
    %c0_i32 = arith.constant 0 : i32
    %c0_i32_0 = arith.constant 0 : i32
    %c0_i32_1 = arith.constant 0 : i32
    return %c0_i32, %c0_i32_0 : i32, i32
  }
  func.func @transform_6(%arg0: i32) -> (i32, i32) {
    %c0_i32 = arith.constant 0 : i32
    %c0_i32_0 = arith.constant 0 : i32
    %c0_i32_1 = arith.constant 0 : i32
    return %c0_i32, %c0_i32_0 : i32, i32
  }
  func.func @transform_7(%arg0: i32) -> (i32, i32) {
    %c0_i32 = arith.constant 0 : i32
    %c0_i32_0 = arith.constant 0 : i32
    return %arg0, %c0_i32 : i32, i32
  }
}

</mosaic_0001>

<llo_original>
// kernel: tpu_custom_call.1
$region0: #{tpu_custom_call.1}
  #allocation0 [shape = 'u32[]', space=smem, size = 0x4, offset = 0x4, fixed_abs, tag = 'smem constant byte address 0x4 - core index']
  #allocation1 [shape = 'u32[144,128]{1,0:T(1,128)}', space=vmem, size = 0x12000, scoped, tag = 'internal scratch']
  %s0 = inlined_call_operand.hbm [shape: f32[2,1024], index: 0, kind: input, shape index: {}]
  %s1 = inlined_call_operand.hbm [shape: bf16[1024,384], index: 1, kind: input, shape index: {}]
  %s2 = inlined_call_operand.vmem [shape: f32[1,384], index: 2, kind: input, shape index: {}]
  %s3 = inlined_call_operand.hbm [shape: bf16[384,128], index: 3, kind: input, shape index: {}]
  %s4 = inlined_call_operand.vmem [shape: f32[1,128], index: 4, kind: input, shape index: {}]
  %s5 = inlined_call_operand.hbm [shape: bf16[128,128], index: 5, kind: input, shape index: {}]
  %s6 = inlined_call_operand.vmem [shape: f32[1,128], index: 6, kind: input, shape index: {}]
  %s7 = inlined_call_operand.hbm [shape: f32[2,128], index: 7, kind: output, shape index: {}]
  %s8 = sld [smem:[#allocation0]]
  $region54: #{tpu_custom_call.1} parent=0
    _
  %s10 = ssub.s32 1, %s8
  %s11 = scalar_select 0, %s10, %s8
  $region1: #{tpu_custom_call.1} parent=0
    #allocation2 [shape = 'u8[32768]{0}', space=vmem, size = 0x8000, scoped, tag = 'input window, operand 0, single buffered']
    #allocation3 [shape = 's32[1]{0}', space=sflag, size = 0x4, scoped, tag = 'scoped memory for tpu_custom_call.1']
    #allocation4 [shape = 's32[1]{0}', space=sflag, size = 0x4, scoped, tag = 'scoped memory for tpu_custom_call.1']
    #allocation5 [shape = 'u8[786432]{0}', space=vmem, size = 0xc0000, scoped, tag = 'input window, operand 1, single buffered']
    #allocation6 [shape = 's32[1]{0}', space=sflag, size = 0x4, scoped, tag = 'scoped memory for tpu_custom_call.1']
    #allocation7 [shape = 'u8[98304]{0}', space=vmem, size = 0x18000, scoped, tag = 'input window, operand 3, single buffered']
    #allocation8 [shape = 'u8[32768]{0}', space=vmem, size = 0x8000, scoped, tag = 'input window, operand 5, single buffered']
    #allocation9 [shape = 's32[1]{0}', space=sflag, size = 0x4, scoped, tag = 'scoped memory for tpu_custom_call.1']
    #allocation10 [shape = 'u8[4096]{0}', space=vmem, size = 0x1000, scoped, tag = 'output window, operand 0, single buffered']
    %12 = vsyncpa [#allocation3], 0
    %13 = vsyncpa [#allocation6], 0
    %14 = vsyncpa [#allocation9], 0
    %15 = vsyncpa [#allocation4], 0
    // Predicated region
    $region2: #{tpu_custom_call.1} parent=1 // pred_check
      _
    $region3: #{tpu_custom_call.1} parent=1 // pred_check_branch
      %17 = sbr.rel (0) target = $region5
    $region4: #{tpu_custom_call.1} parent=1 // pred_region
      %s19 = ssub.s32 1024, 256
      %20 = vsyncadd [#allocation3], %s19
      %s21 = sshll.u32 [#allocation2], 4
      %s22 = int_to_ptr.vmem [resolvable:$true] %s21
      %27 = dma.hbm_to_vmem [thread:$0]  %s0, 256, %s22, [#allocation3], 256, 256, 16
    $region5: #{tpu_custom_call.1} parent=1 // pred_fallthru
      _
    // Predicated region
    $region6: #{tpu_custom_call.1} parent=1 // pred_check
      _
    $region7: #{tpu_custom_call.1} parent=1 // pred_check_branch
      %29 = sbr.rel (0) target = $region9
    $region8: #{tpu_custom_call.1} parent=1 // pred_region
      %s31 = ssub.s32 24576, 24576
      %32 = vsyncadd [#allocation6], %s31
      %s33 = sshll.u32 [#allocation5], 4
      %s34 = int_to_ptr.vmem [resolvable:$true] %s33
      %39 = dma.hbm_to_vmem [thread:$0]  %s1, 24576, %s34, [#allocation6], 192, 192, 12
    $region9: #{tpu_custom_call.1} parent=1 // pred_fallthru
      _
    // Predicated region
    $region10: #{tpu_custom_call.1} parent=1 // pred_check
      _
    $region11: #{tpu_custom_call.1} parent=1 // pred_check_branch
      %41 = sbr.rel (0) target = $region13
    $region12: #{tpu_custom_call.1} parent=1 // pred_region
      _
    $region13: #{tpu_custom_call.1} parent=1 // pred_fallthru
      _
    // Predicated region
    $region14: #{tpu_custom_call.1} parent=1 // pred_check
      _
    $region15: #{tpu_custom_call.1} parent=1 // pred_check_branch
      %43 = sbr.rel (0) target = $region17
    $region16: #{tpu_custom_call.1} parent=1 // pred_region
      %s45 = ssub.s32 3072, 3072
      %46 = vsyncadd [#allocation6], %s45
      %s47 = sshll.u32 [#allocation7], 4
      %s48 = int_to_ptr.vmem [resolvable:$true] %s47
      %53 = dma.hbm_to_vmem [thread:$0]  %s3, 3072, %s48, [#allocation6], 64, 64, 4
    $region17: #{tpu_custom_call.1} parent=1 // pred_fallthru
      _
    // Predicated region
    $region18: #{tpu_custom_call.1} parent=1 // pred_check
      _
    $region19: #{tpu_custom_call.1} parent=1 // pred_check_branch
      %55 = sbr.rel (0) target = $region21
    $region20: #{tpu_custom_call.1} parent=1 // pred_region
      _
    $region21: #{tpu_custom_call.1} parent=1 // pred_fallthru
      _
    // Predicated region
    $region22: #{tpu_custom_call.1} parent=1 // pred_check
      _
    $region23: #{tpu_custom_call.1} parent=1 // pred_check_branch
      %57 = sbr.rel (0) target = $region25
    $region24: #{tpu_custom_call.1} parent=1 // pred_region
      %s59 = ssub.s32 1024, 1024
      %60 = vsyncadd [#allocation9], %s59
      %s61 = sshll.u32 [#allocation8], 4
      %s62 = int_to_ptr.vmem [resolvable:$true] %s61
      %67 = dma.hbm_to_vmem [thread:$0]  %s5, 1024, %s62, [#allocation9], 64, 64, 4
    $region25: #{tpu_custom_call.1} parent=1 // pred_fallthru
      _
    // Predicated region
    $region26: #{tpu_custom_call.1} parent=1 // pred_check
      _
    $region27: #{tpu_custom_call.1} parent=1 // pred_check_branch
      %69 = sbr.rel (0) target = $region29
    $region28: #{tpu_custom_call.1} parent=1 // pred_region
      _
    $region29: #{tpu_custom_call.1} parent=1 // pred_fallthru
      _
    // Predicated region
    $region30: #{tpu_custom_call.1} parent=1 // pred_check
      _
    $region31: #{tpu_custom_call.1} parent=1 // pred_check_branch
      %71 = sbr.rel (0) target = $region33
    $region32: #{tpu_custom_call.1} parent=1 // pred_region
      %72 = dma.done [#allocation3], 1024
    $region33: #{tpu_custom_call.1} parent=1 // pred_fallthru
      _
    // Predicated region
    $region34: #{tpu_custom_call.1} parent=1 // pred_check
      _
    $region35: #{tpu_custom_call.1} parent=1 // pred_check_branch
      %74 = sbr.rel (0) target = $region37
    $region36: #{tpu_custom_call.1} parent=1 // pred_region
      %75 = dma.done [#allocation6], 24576
    $region37: #{tpu_custom_call.1} parent=1 // pred_fallthru
      _
    // Predicated region
    $region38: #{tpu_custom_call.1} parent=1 // pred_check
      _
    $region39: #{tpu_custom_call.1} parent=1 // pred_check_branch
      %77 = sbr.rel (0) target = $region41
    $region40: #{tpu_custom_call.1} parent=1 // pred_region
      %78 = dma.done [#allocation6], 3072
    $region41: #{tpu_custom_call.1} parent=1 // pred_fallthru
      _
    // Predicated region
    $region42: #{tpu_custom_call.1} parent=1 // pred_check
      _
    $region43: #{tpu_custom_call.1} parent=1 // pred_check_branch
      %80 = sbr.rel (0) target = $region45
    $region44: #{tpu_custom_call.1} parent=1 // pred_region
      %81 = dma.done [#allocation9], 1024
    $region45: #{tpu_custom_call.1} parent=1 // pred_fallthru
      _
    %v83 = vld [vmem:[#allocation2] sm:$0xff]
    %v84 = vld [vmem:[#allocation2 + $0x8] sm:$0xff]
    %v85 = vld [vmem:[#allocation2 + $0x10] sm:$0xff]
    %v86 = vld [vmem:[#allocation2 + $0x18] sm:$0xff]
    %v87 = vld [vmem:[#allocation2 + $0x20] sm:$0xff]
    %v88 = vld [vmem:[#allocation2 + $0x28] sm:$0xff]
    %v89 = vld [vmem:[#allocation2 + $0x30] sm:$0xff]
    %v90 = vld [vmem:[#allocation2 + $0x38] sm:$0xff]
    %v99 = vcombine.low %v83, %v85
    %v100 = vcombine.high %v83, %v85
    %v101 = vcombine.low %v87, %v89
    %v102 = vcombine.high %v87, %v89
    %v104 = vunpack.c.l.s4 1983009808
    %v105 = vunpack.c.0.s8 %v104
    %v106 = vlaneseq
    %v107 = vshrl.u32 %v106, 7
    %v108 = vsub.s32 %v105, %v107
    %v109 = vrot.slane %v99, %v108
    %v111 = vunpack.c.l.s4 1983009808
    %v112 = vunpack.c.0.s8 %v111
    %v113 = vlaneseq
    %v114 = vshrl.u32 %v113, 7
    %v115 = vsub.s32 %v112, %v114
    %v116 = vrot.slane %v100, %v115
    %v118 = vunpack.c.l.s4 1983009808
    %v119 = vunpack.c.0.s8 %v118
    %v120 = vlaneseq
    %v121 = vshrl.u32 %v120, 7
    %v122 = vsub.s32 %v119, %v121
    %v123 = vrot.slane %v101, %v122
    %v125 = vunpack.c.l.s4 1983009808
    %v126 = vunpack.c.0.s8 %v125
    %v127 = vlaneseq
    %v128 = vshrl.u32 %v127, 7
    %v129 = vsub.s32 %v126, %v128
    %v130 = vrot.slane %v102, %v129
    %v131 = vcombine.low %v109, %v123
    %v132 = vcombine.high %v109, %v123
    %v133 = vcombine.low %v116, %v130
    %v134 = vcombine.high %v116, %v130
    %v135 = vcombine.low %v84, %v86
    %v136 = vcombine.high %v84, %v86
    %v137 = vcombine.low %v88, %v90
    %v138 = vcombine.high %v88, %v90
    %v140 = vunpack.c.l.s4 1983009808
    %v141 = vunpack.c.0.s8 %v140
    %v142 = vlaneseq
    %v143 = vshrl.u32 %v142, 7
    %v144 = vsub.s32 %v141, %v143
    %v145 = vrot.slane %v135, %v144
    %v147 = vunpack.c.l.s4 1983009808
    %v148 = vunpack.c.0.s8 %v147
    %v149 = vlaneseq
    %v150 = vshrl.u32 %v149, 7
    %v151 = vsub.s32 %v148, %v150
    %v152 = vrot.slane %v136, %v151
    %v154 = vunpack.c.l.s4 1983009808
    %v155 = vunpack.c.0.s8 %v154
    %v156 = vlaneseq
    %v157 = vshrl.u32 %v156, 7
    %v158 = vsub.s32 %v155, %v157
    %v159 = vrot.slane %v137, %v158
    %v161 = vunpack.c.l.s4 1983009808
    %v162 = vunpack.c.0.s8 %v161
    %v163 = vlaneseq
    %v164 = vshrl.u32 %v163, 7
    %v165 = vsub.s32 %v162, %v164
    %v166 = vrot.slane %v138, %v165
    %v167 = vcombine.low %v145, %v159
    %v168 = vcombine.high %v145, %v159
    %v169 = vcombine.low %v152, %v166
    %v170 = vcombine.high %v152, %v166
    %v179 = vpack.c.bf16 %v131, %v131
    %v180 = vpack.c.bf16 %v132, %v132
    %v181 = vpack.c.bf16 %v133, %v133
    %v182 = vpack.c.bf16 %v134, %v134
    %v183 = vpack.c.bf16 %v167, %v167
    %v184 = vpack.c.bf16 %v168, %v168
    %v185 = vpack.c.bf16 %v169, %v169
    %v186 = vpack.c.bf16 %v170, %v170
    %v187 = vld [vmem:[#allocation5] sm:$0xff]
    %v188 = vld [vmem:[#allocation5 + $0x8] sm:$0xf]
    %v189 = vld [vmem:[#allocation5 + $0xc] sm:$0xff]
    %v190 = vld [vmem:[#allocation5 + $0x14] sm:$0xf]
    %v191 = vld [vmem:[#allocation5 + $0x18] sm:$0xff]
    %v192 = vld [vmem:[#allocation5 + $0x20] sm:$0xf]
    %v193 = vld [vmem:[#allocation5 + $0x24] sm:$0xff]
    %v194 = vld [vmem:[#allocation5 + $0x2c] sm:$0xf]
    %v195 = vld [vmem:[#allocation5 + $0x30] sm:$0xff]
    %v196 = vld [vmem:[#allocation5 + $0x38] sm:$0xf]
    %v197 = vld [vmem:[#allocation5 + $0x3c] sm:$0xff]
    %v198 = vld [vmem:[#allocation5 + $0x44] sm:$0xf]
    %v199 = vld [vmem:[#allocation5 + $0x48] sm:$0xff]
    %v200 = vld [vmem:[#allocation5 + $0x50] sm:$0xf]
    %v201 = vld [vmem:[#allocation5 + $0x54] sm:$0xff]
    %v202 = vld [vmem:[#allocation5 + $0x5c] sm:$0xf]
    %v203 = vld [vmem:[#allocation5 + $0x60] sm:$0xff]
    %v204 = vld [vmem:[#allocation5 + $0x68] sm:$0xf]
    %v205 = vld [vmem:[#allocation5 + $0x6c] sm:$0xff]
    %v206 = vld [vmem:[#allocation5 + $0x74] sm:$0xf]
    %v207 = vld [vmem:[#allocation5 + $0x78] sm:$0xff]
    %v208 = vld [vmem:[#allocation5 + $0x80] sm:$0xf]
    %v209 = vld [vmem:[#allocation5 + $0x84] sm:$0xff]
    %v210 = vld [vmem:[#allocation5 + $0x8c] sm:$0xf]
    %v211 = vld [vmem:[#allocation5 + $0x90] sm:$0xff]
    %v212 = vld [vmem:[#allocation5 + $0x98] sm:$0xf]
    %v213 = vld [vmem:[#allocation5 + $0x9c] sm:$0xff]
    %v214 = vld [vmem:[#allocation5 + $0xa4] sm:$0xf]
    %v215 = vld [vmem:[#allocation5 + $0xa8] sm:$0xff]
    %v216 = vld [vmem:[#allocation5 + $0xb0] sm:$0xf]
    %v217 = vld [vmem:[#allocation5 + $0xb4] sm:$0xff]
    %v218 = vld [vmem:[#allocation5 + $0xbc] sm:$0xf]
    %v219 = vld [vmem:[#allocation5 + $0xc0] sm:$0xff]
    %v220 = vld [vmem:[#allocation5 + $0xc8] sm:$0xf]
    %v221 = vld [vmem:[#allocation5 + $0xcc] sm:$0xff]
    %v222 = vld [vmem:[#allocation5 + $0xd4] sm:$0xf]
    %v223 = vld [vmem:[#allocation5 + $0xd8] sm:$0xff]
    %v224 = vld [vmem:[#allocation5 + $0xe0] sm:$0xf]
    %v225 = vld [vmem:[#allocation5 + $0xe4] sm:$0xff]
    %v226 = vld [vmem:[#allocation5 + $0xec] sm:$0xf]
    %v227 = vld [vmem:[#allocation5 + $0xf0] sm:$0xff]
    %v228 = vld [vmem:[#allocation5 + $0xf8] sm:$0xf]
    %v229 = vld [vmem:[#allocation5 + $0xfc] sm:$0xff]
    %v230 = vld [vmem:[#allocation5 + $0x104] sm:$0xf]
    %v231 = vld [vmem:[#allocation5 + $0x108] sm:$0xff]
    %v232 = vld [vmem:[#allocation5 + $0x110] sm:$0xf]
    %v233 = vld [vmem:[#allocation5 + $0x114] sm:$0xff]
    %v234 = vld [vmem:[#allocation5 + $0x11c] sm:$0xf]
    %v235 = vld [vmem:[#allocation5 + $0x120] sm:$0xff]
    %v236 = vld [vmem:[#allocation5 + $0x128] sm:$0xf]
    %v237 = vld [vmem:[#allocation5 + $0x12c] sm:$0xff]
    %v238 = vld [vmem:[#allocation5 + $0x134] sm:$0xf]
    %v239 = vld [vmem:[#allocation5 + $0x138] sm:$0xff]
    %v240 = vld [vmem:[#allocation5 + $0x140] sm:$0xf]
    %v241 = vld [vmem:[#allocation5 + $0x144] sm:$0xff]
    %v242 = vld [vmem:[#allocation5 + $0x14c] sm:$0xf]
    %v243 = vld [vmem:[#allocation5 + $0x150] sm:$0xff]
    %v244 = vld [vmem:[#allocation5 + $0x158] sm:$0xf]
    %v245 = vld [vmem:[#allocation5 + $0x15c] sm:$0xff]
    %v246 = vld [vmem:[#allocation5 + $0x164] sm:$0xf]
    %v247 = vld [vmem:[#allocation5 + $0x168] sm:$0xff]
    %v248 = vld [vmem:[#allocation5 + $0x170] sm:$0xf]
    %v249 = vld [vmem:[#allocation5 + $0x174] sm:$0xff]
    %v250 = vld [vmem:[#allocation5 + $0x17c] sm:$0xf]
    %v251 = vld [vmem:[#allocation5 + $0x180] sm:$0xff]
    %v252 = vld [vmem:[#allocation5 + $0x188] sm:$0xf]
    %v253 = vld [vmem:[#allocation5 + $0x18c] sm:$0xff]
    %v254 = vld [vmem:[#allocation5 + $0x194] sm:$0xf]
    %v255 = vld [vmem:[#allocation5 + $0x198] sm:$0xff]
    %v256 = vld [vmem:[#allocation5 + $0x1a0] sm:$0xf]
    %v257 = vld [vmem:[#allocation5 + $0x1a4] sm:$0xff]
    %v258 = vld [vmem:[#allocation5 + $0x1ac] sm:$0xf]
    %v259 = vld [vmem:[#allocation5 + $0x1b0] sm:$0xff]
    %v260 = vld [vmem:[#allocation5 + $0x1b8] sm:$0xf]
    %v261 = vld [vmem:[#allocation5 + $0x1bc] sm:$0xff]
    %v262 = vld [vmem:[#allocation5 + $0x1c4] sm:$0xf]
    %v263 = vld [vmem:[#allocation5 + $0x1c8] sm:$0xff]
    %v264 = vld [vmem:[#allocation5 + $0x1d0] sm:$0xf]
    %v265 = vld [vmem:[#allocation5 + $0x1d4] sm:$0xff]
    %v266 = vld [vmem:[#allocation5 + $0x1dc] sm:$0xf]
    %v267 = vld [vmem:[#allocation5 + $0x1e0] sm:$0xff]
    %v268 = vld [vmem:[#allocation5 + $0x1e8] sm:$0xf]
    %v269 = vld [vmem:[#allocation5 + $0x1ec] sm:$0xff]
    %v270 = vld [vmem:[#allocation5 + $0x1f4] sm:$0xf]
    %v271 = vld [vmem:[#allocation5 + $0x1f8] sm:$0xff]
    %v272 = vld [vmem:[#allocation5 + $0x200] sm:$0xf]
    %v273 = vld [vmem:[#allocation5 + $0x204] sm:$0xff]
    %v274 = vld [vmem:[#allocation5 + $0x20c] sm:$0xf]
    %v275 = vld [vmem:[#allocation5 + $0x210] sm:$0xff]
    %v276 = vld [vmem:[#allocation5 + $0x218] sm:$0xf]
    %v277 = vld [vmem:[#allocation5 + $0x21c] sm:$0xff]
    %v278 = vld [vmem:[#allocation5 + $0x224] sm:$0xf]
    %v279 = vld [vmem:[#allocation5 + $0x228] sm:$0xff]
    %v280 = vld [vmem:[#allocation5 + $0x230] sm:$0xf]
    %v281 = vld [vmem:[#allocation5 + $0x234] sm:$0xff]
    %v282 = vld [vmem:[#allocation5 + $0x23c] sm:$0xf]
    %v283 = vld [vmem:[#allocation5 + $0x240] sm:$0xff]
    %v284 = vld [vmem:[#allocation5 + $0x248] sm:$0xf]
    %v285 = vld [vmem:[#allocation5 + $0x24c] sm:$0xff]
    %v286 = vld [vmem:[#allocation5 + $0x254] sm:$0xf]
    %v287 = vld [vmem:[#allocation5 + $0x258] sm:$0xff]
    %v288 = vld [vmem:[#allocation5 + $0x260] sm:$0xf]
    %v289 = vld [vmem:[#allocation5 + $0x264] sm:$0xff]
    %v290 = vld [vmem:[#allocation5 + $0x26c] sm:$0xf]
    %v291 = vld [vmem:[#allocation5 + $0x270] sm:$0xff]
    %v292 = vld [vmem:[#allocation5 + $0x278] sm:$0xf]
    %v293 = vld [vmem:[#allocation5 + $0x27c] sm:$0xff]
    %v294 = vld [vmem:[#allocation5 + $0x284] sm:$0xf]
    %v295 = vld [vmem:[#allocation5 + $0x288] sm:$0xff]
    %v296 = vld [vmem:[#allocation5 + $0x290] sm:$0xf]
    %v297 = vld [vmem:[#allocation5 + $0x294] sm:$0xff]
    %v298 = vld [vmem:[#allocation5 + $0x29c] sm:$0xf]
    %v299 = vld [vmem:[#allocation5 + $0x2a0] sm:$0xff]
    %v300 = vld [vmem:[#allocation5 + $0x2a8] sm:$0xf]
    %v301 = vld [vmem:[#allocation5 + $0x2ac] sm:$0xff]
    %v302 = vld [vmem:[#allocation5 + $0x2b4] sm:$0xf]
    %v303 = vld [vmem:[#allocation5 + $0x2b8] sm:$0xff]
    %v304 = vld [vmem:[#allocation5 + $0x2c0] sm:$0xf]
    %v305 = vld [vmem:[#allocation5 + $0x2c4] sm:$0xff]
    %v306 = vld [vmem:[#allocation5 + $0x2cc] sm:$0xf]
    %v307 = vld [vmem:[#allocation5 + $0x2d0] sm:$0xff]
    %v308 = vld [vmem:[#allocation5 + $0x2d8] sm:$0xf]
    %v309 = vld [vmem:[#allocation5 + $0x2dc] sm:$0xff]
    %v310 = vld [vmem:[#allocation5 + $0x2e4] sm:$0xf]
    %v311 = vld [vmem:[#allocation5 + $0x2e8] sm:$0xff]
    %v312 = vld [vmem:[#allocation5 + $0x2f0] sm:$0xf]
    %v313 = vld [vmem:[#allocation5 + $0x2f4] sm:$0xff]
    %v314 = vld [vmem:[#allocation5 + $0x2fc] sm:$0xf]
    %v315 = vld [vmem:[#allocation5 + $0x300] sm:$0xff]
    %v316 = vld [vmem:[#allocation5 + $0x308] sm:$0xf]
    %v317 = vld [vmem:[#allocation5 + $0x30c] sm:$0xff]
    %v318 = vld [vmem:[#allocation5 + $0x314] sm:$0xf]
    %v319 = vld [vmem:[#allocation5 + $0x318] sm:$0xff]
    %v320 = vld [vmem:[#allocation5 + $0x320] sm:$0xf]
    %v321 = vld [vmem:[#allocation5 + $0x324] sm:$0xff]
    %v322 = vld [vmem:[#allocation5 + $0x32c] sm:$0xf]
    %v323 = vld [vmem:[#allocation5 + $0x330] sm:$0xff]
    %v324 = vld [vmem:[#allocation5 + $0x338] sm:$0xf]
    %v325 = vld [vmem:[#allocation5 + $0x33c] sm:$0xff]
    %v326 = vld [vmem:[#allocation5 + $0x344] sm:$0xf]
    %v327 = vld [vmem:[#allocation5 + $0x348] sm:$0xff]
    %v328 = vld [vmem:[#allocation5 + $0x350] sm:$0xf]
    %v329 = vld [vmem:[#allocation5 + $0x354] sm:$0xff]
    %v330 = vld [vmem:[#allocation5 + $0x35c] sm:$0xf]
    %v331 = vld [vmem:[#allocation5 + $0x360] sm:$0xff]
    %v332 = vld [vmem:[#allocation5 + $0x368] sm:$0xf]
    %v333 = vld [vmem:[#allocation5 + $0x36c] sm:$0xff]
    %v334 = vld [vmem:[#allocation5 + $0x374] sm:$0xf]
    %v335 = vld [vmem:[#allocation5 + $0x378] sm:$0xff]
    %v336 = vld [vmem:[#allocation5 + $0x380] sm:$0xf]
    %v337 = vld [vmem:[#allocation5 + $0x384] sm:$0xff]
    %v338 = vld [vmem:[#allocation5 + $0x38c] sm:$0xf]
    %v339 = vld [vmem:[#allocation5 + $0x390] sm:$0xff]
    %v340 = vld [vmem:[#allocation5 + $0x398] sm:$0xf]
    %v341 = vld [vmem:[#allocation5 + $0x39c] sm:$0xff]
    %v342 = vld [vmem:[#allocation5 + $0x3a4] sm:$0xf]
    %v343 = vld [vmem:[#allocation5 + $0x3a8] sm:$0xff]
    %v344 = vld [vmem:[#allocation5 + $0x3b0] sm:$0xf]
    %v345 = vld [vmem:[#allocation5 + $0x3b4] sm:$0xff]
    %v346 = vld [vmem:[#allocation5 + $0x3bc] sm:$0xf]
    %v347 = vld [vmem:[#allocation5 + $0x3c0] sm:$0xff]
    %v348 = vld [vmem:[#allocation5 + $0x3c8] sm:$0xf]
    %v349 = vld [vmem:[#allocation5 + $0x3cc] sm:$0xff]
    %v350 = vld [vmem:[#allocation5 + $0x3d4] sm:$0xf]
    %v351 = vld [vmem:[#allocation5 + $0x3d8] sm:$0xff]
    %v352 = vld [vmem:[#allocation5 + $0x3e0] sm:$0xf]
    %v353 = vld [vmem:[#allocation5 + $0x3e4] sm:$0xff]
    %v354 = vld [vmem:[#allocation5 + $0x3ec] sm:$0xf]
    %v355 = vld [vmem:[#allocation5 + $0x3f0] sm:$0xff]
    %v356 = vld [vmem:[#allocation5 + $0x3f8] sm:$0xf]
    %v357 = vld [vmem:[#allocation5 + $0x3fc] sm:$0xff]
    %v358 = vld [vmem:[#allocation5 + $0x404] sm:$0xf]
    %v359 = vld [vmem:[#allocation5 + $0x408] sm:$0xff]
    %v360 = vld [vmem:[#allocation5 + $0x410] sm:$0xf]
    %v361 = vld [vmem:[#allocation5 + $0x414] sm:$0xff]
    %v362 = vld [vmem:[#allocation5 + $0x41c] sm:$0xf]
    %v363 = vld [vmem:[#allocation5 + $0x420] sm:$0xff]
    %v364 = vld [vmem:[#allocation5 + $0x428] sm:$0xf]
    %v365 = vld [vmem:[#allocation5 + $0x42c] sm:$0xff]
    %v366 = vld [vmem:[#allocation5 + $0x434] sm:$0xf]
    %v367 = vld [vmem:[#allocation5 + $0x438] sm:$0xff]
    %v368 = vld [vmem:[#allocation5 + $0x440] sm:$0xf]
    %v369 = vld [vmem:[#allocation5 + $0x444] sm:$0xff]
    %v370 = vld [vmem:[#allocation5 + $0x44c] sm:$0xf]
    %v371 = vld [vmem:[#allocation5 + $0x450] sm:$0xff]
    %v372 = vld [vmem:[#allocation5 + $0x458] sm:$0xf]
    %v373 = vld [vmem:[#allocation5 + $0x45c] sm:$0xff]
    %v374 = vld [vmem:[#allocation5 + $0x464] sm:$0xf]
    %v375 = vld [vmem:[#allocation5 + $0x468] sm:$0xff]
    %v376 = vld [vmem:[#allocation5 + $0x470] sm:$0xf]
    %v377 = vld [vmem:[#allocation5 + $0x474] sm:$0xff]
    %v378 = vld [vmem:[#allocation5 + $0x47c] sm:$0xf]
    %v379 = vld [vmem:[#allocation5 + $0x480] sm:$0xff]
    %v380 = vld [vmem:[#allocation5 + $0x488] sm:$0xf]
    %v381 = vld [vmem:[#allocation5 + $0x48c] sm:$0xff]
    %v382 = vld [vmem:[#allocation5 + $0x494] sm:$0xf]
    %v383 = vld [vmem:[#allocation5 + $0x498] sm:$0xff]
    %v384 = vld [vmem:[#allocation5 + $0x4a0] sm:$0xf]
    %v385 = vld [vmem:[#allocation5 + $0x4a4] sm:$0xff]
    %v386 = vld [vmem:[#allocation5 + $0x4ac] sm:$0xf]
    %v387 = vld [vmem:[#allocation5 + $0x4b0] sm:$0xff]
    %v388 = vld [vmem:[#allocation5 + $0x4b8] sm:$0xf]
    %v389 = vld [vmem:[#allocation5 + $0x4bc] sm:$0xff]
    %v390 = vld [vmem:[#allocation5 + $0x4c4] sm:$0xf]
    %v391 = vld [vmem:[#allocation5 + $0x4c8] sm:$0xff]
    %v392 = vld [vmem:[#allocation5 + $0x4d0] sm:$0xf]
    %v393 = vld [vmem:[#allocation5 + $0x4d4] sm:$0xff]
    %v394 = vld [vmem:[#allocation5 + $0x4dc] sm:$0xf]
    %v395 = vld [vmem:[#allocation5 + $0x4e0] sm:$0xff]
    %v396 = vld [vmem:[#allocation5 + $0x4e8] sm:$0xf]
    %v397 = vld [vmem:[#allocation5 + $0x4ec] sm:$0xff]
    %v398 = vld [vmem:[#allocation5 + $0x4f4] sm:$0xf]
    %v399 = vld [vmem:[#allocation5 + $0x4f8] sm:$0xff]
    %v400 = vld [vmem:[#allocation5 + $0x500] sm:$0xf]
    %v401 = vld [vmem:[#allocation5 + $0x504] sm:$0xff]
    %v402 = vld [vmem:[#allocation5 + $0x50c] sm:$0xf]
    %v403 = vld [vmem:[#allocation5 + $0x510] sm:$0xff]
    %v404 = vld [vmem:[#allocation5 + $0x518] sm:$0xf]
    %v405 = vld [vmem:[#allocation5 + $0x51c] sm:$0xff]
    %v406 = vld [vmem:[#allocation5 + $0x524] sm:$0xf]
    %v407 = vld [vmem:[#allocation5 + $0x528] sm:$0xff]
    %v408 = vld [vmem:[#allocation5 + $0x530] sm:$0xf]
    %v409 = vld [vmem:[#allocation5 + $0x534] sm:$0xff]
    %v410 = vld [vmem:[#allocation5 + $0x53c] sm:$0xf]
    %v411 = vld [vmem:[#allocation5 + $0x540] sm:$0xff]
    %v412 = vld [vmem:[#allocation5 + $0x548] sm:$0xf]
    %v413 = vld [vmem:[#allocation5 + $0x54c] sm:$0xff]
    %v414 = vld [vmem:[#allocation5 + $0x554] sm:$0xf]
    %v415 = vld [vmem:[#allocation5 + $0x558] sm:$0xff]
    %v416 = vld [vmem:[#allocation5 + $0x560] sm:$0xf]
    %v417 = vld [vmem:[#allocation5 + $0x564] sm:$0xff]
    %v418 = vld [vmem:[#allocation5 + $0x56c] sm:$0xf]
    %v419 = vld [vmem:[#allocation5 + $0x570] sm:$0xff]
    %v420 = vld [vmem:[#allocation5 + $0x578] sm:$0xf]
    %v421 = vld [vmem:[#allocation5 + $0x57c] sm:$0xff]
    %v422 = vld [vmem:[#allocation5 + $0x584] sm:$0xf]
    %v423 = vld [vmem:[#allocation5 + $0x588] sm:$0xff]
    %v424 = vld [vmem:[#allocation5 + $0x590] sm:$0xf]
    %v425 = vld [vmem:[#allocation5 + $0x594] sm:$0xff]
    %v426 = vld [vmem:[#allocation5 + $0x59c] sm:$0xf]
    %v427 = vld [vmem:[#allocation5 + $0x5a0] sm:$0xff]
    %v428 = vld [vmem:[#allocation5 + $0x5a8] sm:$0xf]
    %v429 = vld [vmem:[#allocation5 + $0x5ac] sm:$0xff]
    %v430 = vld [vmem:[#allocation5 + $0x5b4] sm:$0xf]
    %v431 = vld [vmem:[#allocation5 + $0x5b8] sm:$0xff]
    %v432 = vld [vmem:[#allocation5 + $0x5c0] sm:$0xf]
    %v433 = vld [vmem:[#allocation5 + $0x5c4] sm:$0xff]
    %v434 = vld [vmem:[#allocation5 + $0x5cc] sm:$0xf]
    %v435 = vld [vmem:[#allocation5 + $0x5d0] sm:$0xff]
    %v436 = vld [vmem:[#allocation5 + $0x5d8] sm:$0xf]
    %v437 = vld [vmem:[#allocation5 + $0x5dc] sm:$0xff]
    %v438 = vld [vmem:[#allocation5 + $0x5e4] sm:$0xf]
    %v439 = vld [vmem:[#allocation5 + $0x5e8] sm:$0xff]
    %v440 = vld [vmem:[#allocation5 + $0x5f0] sm:$0xf]
    %v441 = vld [vmem:[#allocation5 + $0x5f4] sm:$0xff]
    %v442 = vld [vmem:[#allocation5 + $0x5fc] sm:$0xf]
    %v443 = vld [vmem:[%s2] sm:$0x7]
    %v445 = vlaneseq
    %v446 = vshrl.u32 %v445, 7
    %v447 = vsub.s32 0, %v446
    %v448 = vrot.slane %v443, %v447
    %v449 = vlaneseq
    %v450 = vshrl.u32 %v449, 7
    %v451 = vsub.s32 1, %v450
    %v452 = vrot.slane %v443, %v451
    %v453 = vlaneseq
    %v454 = vshrl.u32 %v453, 7
    %v455 = vsub.s32 2, %v454
    %v456 = vrot.slane %v443, %v455
    %v716 = vunpack.c.l.b16 %v187
    %v717 = vunpack.c.h.b16 %v187
    %v718 = vunpack.c.l.b16 %v188
    %v719 = vunpack.c.l.b16 %v189
    %v720 = vunpack.c.h.b16 %v189
    %v721 = vunpack.c.l.b16 %v190
    %v722 = vunpack.c.l.b16 %v191
    %v723 = vunpack.c.h.b16 %v191
    %v724 = vunpack.c.l.b16 %v192
    %v725 = vunpack.c.l.b16 %v193
    %v726 = vunpack.c.h.b16 %v193
    %v727 = vunpack.c.l.b16 %v194
    %v728 = vunpack.c.l.b16 %v195
    %v729 = vunpack.c.h.b16 %v195
    %v730 = vunpack.c.l.b16 %v196
    %v731 = vunpack.c.l.b16 %v197
    %v732 = vunpack.c.h.b16 %v197
    %v733 = vunpack.c.l.b16 %v198
    %v734 = vunpack.c.l.b16 %v199
    %v735 = vunpack.c.h.b16 %v199
    %v736 = vunpack.c.l.b16 %v200
    %v737 = vunpack.c.l.b16 %v201
    %v738 = vunpack.c.h.b16 %v201
    %v739 = vunpack.c.l.b16 %v202
    %v740 = vunpack.c.l.b16 %v203
    %v741 = vunpack.c.h.b16 %v203
    %v742 = vunpack.c.l.b16 %v204
    %v743 = vunpack.c.l.b16 %v205
    %v744 = vunpack.c.h.b16 %v205
    %v745 = vunpack.c.l.b16 %v206
    %v746 = vunpack.c.l.b16 %v207
    %v747 = vunpack.c.h.b16 %v207
    %v748 = vunpack.c.l.b16 %v208
    %v749 = vunpack.c.l.b16 %v209
    %v750 = vunpack.c.h.b16 %v209
    %v751 = vunpack.c.l.b16 %v210
    %v752 = vunpack.c.l.b16 %v211
    %v753 = vunpack.c.h.b16 %v211
    %v754 = vunpack.c.l.b16 %v212
    %v755 = vunpack.c.l.b16 %v213
    %v756 = vunpack.c.h.b16 %v213
    %v757 = vunpack.c.l.b16 %v214
    %v758 = vunpack.c.l.b16 %v215
    %v759 = vunpack.c.h.b16 %v215
    %v760 = vunpack.c.l.b16 %v216
    %v761 = vunpack.c.l.b16 %v217
    %v762 = vunpack.c.h.b16 %v217
    %v763 = vunpack.c.l.b16 %v218
    %v764 = vunpack.c.l.b16 %v219
    %v765 = vunpack.c.h.b16 %v219
    %v766 = vunpack.c.l.b16 %v220
    %v767 = vunpack.c.l.b16 %v221
    %v768 = vunpack.c.h.b16 %v221
    %v769 = vunpack.c.l.b16 %v222
    %v770 = vunpack.c.l.b16 %v223
    %v771 = vunpack.c.h.b16 %v223
    %v772 = vunpack.c.l.b16 %v224
    %v773 = vunpack.c.l.b16 %v225
    %v774 = vunpack.c.h.b16 %v225
    %v775 = vunpack.c.l.b16 %v226
    %v776 = vunpack.c.l.b16 %v227
    %v777 = vunpack.c.h.b16 %v227
    %v778 = vunpack.c.l.b16 %v228
    %v779 = vunpack.c.l.b16 %v229
    %v780 = vunpack.c.h.b16 %v229
    %v781 = vunpack.c.l.b16 %v230
    %v782 = vunpack.c.l.b16 %v231
    %v783 = vunpack.c.h.b16 %v231
    %v784 = vunpack.c.l.b16 %v232
    %v785 = vunpack.c.l.b16 %v233
    %v786 = vunpack.c.h.b16 %v233
    %v787 = vunpack.c.l.b16 %v234
    %v788 = vunpack.c.l.b16 %v235
    %v789 = vunpack.c.h.b16 %v235
    %v790 = vunpack.c.l.b16 %v236
    %v791 = vunpack.c.l.b16 %v237
    %v792 = vunpack.c.h.b16 %v237
    %v793 = vunpack.c.l.b16 %v238
    %v794 = vunpack.c.l.b16 %v239
    %v795 = vunpack.c.h.b16 %v239
    %v796 = vunpack.c.l.b16 %v240
    %v797 = vunpack.c.l.b16 %v241
    %v798 = vunpack.c.h.b16 %v241
    %v799 = vunpack.c.l.b16 %v242
    %v800 = vunpack.c.l.b16 %v243
    %v801 = vunpack.c.h.b16 %v243
    %v802 = vunpack.c.l.b16 %v244
    %v803 = vunpack.c.l.b16 %v245
    %v804 = vunpack.c.h.b16 %v245
    %v805 = vunpack.c.l.b16 %v246
    %v806 = vunpack.c.l.b16 %v247
    %v807 = vunpack.c.h.b16 %v247
    %v808 = vunpack.c.l.b16 %v248
    %v809 = vunpack.c.l.b16 %v249
    %v810 = vunpack.c.h.b16 %v249
    %v811 = vunpack.c.l.b16 %v250
    %v812 = vunpack.c.l.b16 %v251
    %v813 = vunpack.c.h.b16 %v251
    %v814 = vunpack.c.l.b16 %v252
    %v815 = vunpack.c.l.b16 %v253
    %v816 = vunpack.c.h.b16 %v253
    %v817 = vunpack.c.l.b16 %v254
    %v818 = vunpack.c.l.b16 %v255
    %v819 = vunpack.c.h.b16 %v255
    %v820 = vunpack.c.l.b16 %v256
    %v821 = vunpack.c.l.b16 %v257
    %v822 = vunpack.c.h.b16 %v257
    %v823 = vunpack.c.l.b16 %v258
    %v824 = vunpack.c.l.b16 %v259
    %v825 = vunpack.c.h.b16 %v259
    %v826 = vunpack.c.l.b16 %v260
    %v827 = vunpack.c.l.b16 %v261
    %v828 = vunpack.c.h.b16 %v261
    %v829 = vunpack.c.l.b16 %v262
    %v830 = vunpack.c.l.b16 %v263
    %v831 = vunpack.c.h.b16 %v263
    %v832 = vunpack.c.l.b16 %v264
    %v833 = vunpack.c.l.b16 %v265
    %v834 = vunpack.c.h.b16 %v265
    %v835 = vunpack.c.l.b16 %v266
    %v836 = vunpack.c.l.b16 %v267
    %v837 = vunpack.c.h.b16 %v267
    %v838 = vunpack.c.l.b16 %v268
    %v839 = vunpack.c.l.b16 %v269
    %v840 = vunpack.c.h.b16 %v269
    %v841 = vunpack.c.l.b16 %v270
    %v842 = vunpack.c.l.b16 %v271
    %v843 = vunpack.c.h.b16 %v271
    %v844 = vunpack.c.l.b16 %v272
    %v845 = vunpack.c.l.b16 %v273
    %v846 = vunpack.c.h.b16 %v273
    %v847 = vunpack.c.l.b16 %v274
    %v848 = vunpack.c.l.b16 %v275
    %v849 = vunpack.c.h.b16 %v275
    %v850 = vunpack.c.l.b16 %v276
    %v851 = vunpack.c.l.b16 %v277
    %v852 = vunpack.c.h.b16 %v277
    %v853 = vunpack.c.l.b16 %v278
    %v854 = vunpack.c.l.b16 %v279
    %v855 = vunpack.c.h.b16 %v279
    %v856 = vunpack.c.l.b16 %v280
    %v857 = vunpack.c.l.b16 %v281
    %v858 = vunpack.c.h.b16 %v281
    %v859 = vunpack.c.l.b16 %v282
    %v860 = vunpack.c.l.b16 %v283
    %v861 = vunpack.c.h.b16 %v283
    %v862 = vunpack.c.l.b16 %v284
    %v863 = vunpack.c.l.b16 %v285
    %v864 = vunpack.c.h.b16 %v285
    %v865 = vunpack.c.l.b16 %v286
    %v866 = vunpack.c.l.b16 %v287
    %v867 = vunpack.c.h.b16 %v287
    %v868 = vunpack.c.l.b16 %v288
    %v869 = vunpack.c.l.b16 %v289
    %v870 = vunpack.c.h.b16 %v289
    %v871 = vunpack.c.l.b16 %v290
    %v872 = vunpack.c.l.b16 %v291
    %v873 = vunpack.c.h.b16 %v291
    %v874 = vunpack.c.l.b16 %v292
    %v875 = vunpack.c.l.b16 %v293
    %v876 = vunpack.c.h.b16 %v293
    %v877 = vunpack.c.l.b16 %v294
    %v878 = vunpack.c.l.b16 %v295
    %v879 = vunpack.c.h.b16 %v295
    %v880 = vunpack.c.l.b16 %v296
    %v881 = vunpack.c.l.b16 %v297
    %v882 = vunpack.c.h.b16 %v297
    %v883 = vunpack.c.l.b16 %v298
    %v884 = vunpack.c.l.b16 %v299
    %v885 = vunpack.c.h.b16 %v299
    %v886 = vunpack.c.l.b16 %v300
    %v887 = vunpack.c.l.b16 %v301
    %v888 = vunpack.c.h.b16 %v301
    %v889 = vunpack.c.l.b16 %v302
    %v890 = vunpack.c.l.b16 %v303
    %v891 = vunpack.c.h.b16 %v303
    %v892 = vunpack.c.l.b16 %v304
    %v893 = vunpack.c.l.b16 %v305
    %v894 = vunpack.c.h.b16 %v305
    %v895 = vunpack.c.l.b16 %v306
    %v896 = vunpack.c.l.b16 %v307
    %v897 = vunpack.c.h.b16 %v307
    %v898 = vunpack.c.l.b16 %v308
    %v899 = vunpack.c.l.b16 %v309
    %v900 = vunpack.c.h.b16 %v309
    %v901 = vunpack.c.l.b16 %v310
    %v902 = vunpack.c.l.b16 %v311
    %v903 = vunpack.c.h.b16 %v311
    %v904 = vunpack.c.l.b16 %v312
    %v905 = vunpack.c.l.b16 %v313
    %v906 = vunpack.c.h.b16 %v313
    %v907 = vunpack.c.l.b16 %v314
    %v908 = vunpack.c.l.b16 %v315
    %v909 = vunpack.c.h.b16 %v315
    %v910 = vunpack.c.l.b16 %v316
    %v911 = vunpack.c.l.b16 %v317
    %v912 = vunpack.c.h.b16 %v317
    %v913 = vunpack.c.l.b16 %v318
    %v914 = vunpack.c.l.b16 %v319
    %v915 = vunpack.c.h.b16 %v319
    %v916 = vunpack.c.l.b16 %v320
    %v917 = vunpack.c.l.b16 %v321
    %v918 = vunpack.c.h.b16 %v321
    %v919 = vunpack.c.l.b16 %v322
    %v920 = vunpack.c.l.b16 %v323
    %v921 = vunpack.c.h.b16 %v323
    %v922 = vunpack.c.l.b16 %v324
    %v923 = vunpack.c.l.b16 %v325
    %v924 = vunpack.c.h.b16 %v325
    %v925 = vunpack.c.l.b16 %v326
    %v926 = vunpack.c.l.b16 %v327
    %v927 = vunpack.c.h.b16 %v327
    %v928 = vunpack.c.l.b16 %v328
    %v929 = vunpack.c.l.b16 %v329
    %v930 = vunpack.c.h.b16 %v329
    %v931 = vunpack.c.l.b16 %v330
    %v932 = vunpack.c.l.b16 %v331
    %v933 = vunpack.c.h.b16 %v331
    %v934 = vunpack.c.l.b16 %v332
    %v935 = vunpack.c.l.b16 %v333
    %v936 = vunpack.c.h.b16 %v333
    %v937 = vunpack.c.l.b16 %v334
    %v938 = vunpack.c.l.b16 %v335
    %v939 = vunpack.c.h.b16 %v335
    %v940 = vunpack.c.l.b16 %v336
    %v941 = vunpack.c.l.b16 %v337
    %v942 = vunpack.c.h.b16 %v337
    %v943 = vunpack.c.l.b16 %v338
    %v944 = vunpack.c.l.b16 %v339
    %v945 = vunpack.c.h.b16 %v339
    %v946 = vunpack.c.l.b16 %v340
    %v947 = vunpack.c.l.b16 %v341
    %v948 = vunpack.c.h.b16 %v341
    %v949 = vunpack.c.l.b16 %v342
    %v950 = vunpack.c.l.b16 %v343
    %v951 = vunpack.c.h.b16 %v343
    %v952 = vunpack.c.l.b16 %v344
    %v953 = vunpack.c.l.b16 %v345
    %v954 = vunpack.c.h.b16 %v345
    %v955 = vunpack.c.l.b16 %v346
    %v956 = vunpack.c.l.b16 %v347
    %v957 = vunpack.c.h.b16 %v347
    %v958 = vunpack.c.l.b16 %v348
    %v959 = vunpack.c.l.b16 %v349
    %v960 = vunpack.c.h.b16 %v349
    %v961 = vunpack.c.l.b16 %v350
    %v962 = vunpack.c.l.b16 %v351
    %v963 = vunpack.c.h.b16 %v351
    %v964 = vunpack.c.l.b16 %v352
    %v965 = vunpack.c.l.b16 %v353
    %v966 = vunpack.c.h.b16 %v353
    %v967 = vunpack.c.l.b16 %v354
    %v968 = vunpack.c.l.b16 %v355
    %v969 = vunpack.c.h.b16 %v355
    %v970 = vunpack.c.l.b16 %v356
    %v971 = vunpack.c.l.b16 %v357
    %v972 = vunpack.c.h.b16 %v357
    %v973 = vunpack.c.l.b16 %v358
    %v974 = vunpack.c.l.b16 %v359
    %v975 = vunpack.c.h.b16 %v359
    %v976 = vunpack.c.l.b16 %v360
    %v977 = vunpack.c.l.b16 %v361
    %v978 = vunpack.c.h.b16 %v361
    %v979 = vunpack.c.l.b16 %v362
    %v980 = vunpack.c.l.b16 %v363
    %v981 = vunpack.c.h.b16 %v363
    %v982 = vunpack.c.l.b16 %v364
    %v983 = vunpack.c.l.b16 %v365
    %v984 = vunpack.c.h.b16 %v365
    %v985 = vunpack.c.l.b16 %v366
    %v986 = vunpack.c.l.b16 %v367
    %v987 = vunpack.c.h.b16 %v367
    %v988 = vunpack.c.l.b16 %v368
    %v989 = vunpack.c.l.b16 %v369
    %v990 = vunpack.c.h.b16 %v369
    %v991 = vunpack.c.l.b16 %v370
    %v992 = vunpack.c.l.b16 %v371
    %v993 = vunpack.c.h.b16 %v371
    %v994 = vunpack.c.l.b16 %v372
    %v995 = vunpack.c.l.b16 %v373
    %v996 = vunpack.c.h.b16 %v373
    %v997 = vunpack.c.l.b16 %v374
    %v998 = vunpack.c.l.b16 %v375
    %v999 = vunpack.c.h.b16 %v375
    %v1000 = vunpack.c.l.b16 %v376
    %v1001 = vunpack.c.l.b16 %v377
    %v1002 = vunpack.c.h.b16 %v377
    %v1003 = vunpack.c.l.b16 %v378
    %v1004 = vunpack.c.l.b16 %v379
    %v1005 = vunpack.c.h.b16 %v379
    %v1006 = vunpack.c.l.b16 %v380
    %v1007 = vunpack.c.l.b16 %v381
    %v1008 = vunpack.c.h.b16 %v381
    %v1009 = vunpack.c.l.b16 %v382
    %v1010 = vunpack.c.l.b16 %v383
    %v1011 = vunpack.c.h.b16 %v383
    %v1012 = vunpack.c.l.b16 %v384
    %v1013 = vunpack.c.l.b16 %v385
    %v1014 = vunpack.c.h.b16 %v385
    %v1015 = vunpack.c.l.b16 %v386
    %v1016 = vunpack.c.l.b16 %v387
    %v1017 = vunpack.c.h.b16 %v387
    %v1018 = vunpack.c.l.b16 %v388
    %v1019 = vunpack.c.l.b16 %v389
    %v1020 = vunpack.c.h.b16 %v389
    %v1021 = vunpack.c.l.b16 %v390
    %v1022 = vunpack.c.l.b16 %v391
    %v1023 = vunpack.c.h.b16 %v391
    %v1024 = vunpack.c.l.b16 %v392
    %v1025 = vunpack.c.l.b16 %v393
    %v1026 = vunpack.c.h.b16 %v393
    %v1027 = vunpack.c.l.b16 %v394
    %v1028 = vunpack.c.l.b16 %v395
    %v1029 = vunpack.c.h.b16 %v395
    %v1030 = vunpack.c.l.b16 %v396
    %v1031 = vunpack.c.l.b16 %v397
    %v1032 = vunpack.c.h.b16 %v397
    %v1033 = vunpack.c.l.b16 %v398
    %v1034 = vunpack.c.l.b16 %v399
    %v1035 = vunpack.c.h.b16 %v399
    %v1036 = vunpack.c.l.b16 %v400
    %v1037 = vunpack.c.l.b16 %v401
    %v1038 = vunpack.c.h.b16 %v401
    %v1039 = vunpack.c.l.b16 %v402
    %v1040 = vunpack.c.l.b16 %v403
    %v1041 = vunpack.c.h.b16 %v403
    %v1042 = vunpack.c.l.b16 %v404
    %v1043 = vunpack.c.l.b16 %v405
    %v1044 = vunpack.c.h.b16 %v405
    %v1045 = vunpack.c.l.b16 %v406
    %v1046 = vunpack.c.l.b16 %v407
    %v1047 = vunpack.c.h.b16 %v407
    %v1048 = vunpack.c.l.b16 %v408
    %v1049 = vunpack.c.l.b16 %v409
    %v1050 = vunpack.c.h.b16 %v409
    %v1051 = vunpack.c.l.b16 %v410
    %v1052 = vunpack.c.l.b16 %v411
    %v1053 = vunpack.c.h.b16 %v411
    %v1054 = vunpack.c.l.b16 %v412
    %v1055 = vunpack.c.l.b16 %v413
    %v1056 = vunpack.c.h.b16 %v413
    %v1057 = vunpack.c.l.b16 %v414
    %v1058 = vunpack.c.l.b16 %v415
    %v1059 = vunpack.c.h.b16 %v415
    %v1060 = vunpack.c.l.b16 %v416
    %v1061 = vunpack.c.l.b16 %v417
    %v1062 = vunpack.c.h.b16 %v417
    %v1063 = vunpack.c.l.b16 %v418
    %v1064 = vunpack.c.l.b16 %v419
    %v1065 = vunpack.c.h.b16 %v419
    %v1066 = vunpack.c.l.b16 %v420
    %v1067 = vunpack.c.l.b16 %v421
    %v1068 = vunpack.c.h.b16 %v421
    %v1069 = vunpack.c.l.b16 %v422
    %v1070 = vunpack.c.l.b16 %v423
    %v1071 = vunpack.c.h.b16 %v423
    %v1072 = vunpack.c.l.b16 %v424
    %v1073 = vunpack.c.l.b16 %v425
    %v1074 = vunpack.c.h.b16 %v425
    %v1075 = vunpack.c.l.b16 %v426
    %v1076 = vunpack.c.l.b16 %v427
    %v1077 = vunpack.c.h.b16 %v427
    %v1078 = vunpack.c.l.b16 %v428
    %v1079 = vunpack.c.l.b16 %v429
    %v1080 = vunpack.c.h.b16 %v429
    %v1081 = vunpack.c.l.b16 %v430
    %v1082 = vunpack.c.l.b16 %v431
    %v1083 = vunpack.c.h.b16 %v431
    %v1084 = vunpack.c.l.b16 %v432
    %v1085 = vunpack.c.l.b16 %v433
    %v1086 = vunpack.c.h.b16 %v433
    %v1087 = vunpack.c.l.b16 %v434
    %v1088 = vunpack.c.l.b16 %v435
    %v1089 = vunpack.c.h.b16 %v435
    %v1090 = vunpack.c.l.b16 %v436
    %v1091 = vunpack.c.l.b16 %v437
    %v1092 = vunpack.c.h.b16 %v437
    %v1093 = vunpack.c.l.b16 %v438
    %v1094 = vunpack.c.l.b16 %v439
    %v1095 = vunpack.c.h.b16 %v439
    %v1096 = vunpack.c.l.b16 %v440
    %v1097 = vunpack.c.l.b16 %v441
    %v1098 = vunpack.c.h.b16 %v441
    %v1099 = vunpack.c.l.b16 %v442
    %v1100 = vpack.c.b16 %v719, %v716
    %v1101 = vpack.c.b16 %v720, %v717
    %v1102 = vpack.c.b16 %v721, %v718
    %v1103 = vpack.c.b16 %v725, %v722
    %v1104 = vpack.c.b16 %v726, %v723
    %v1105 = vpack.c.b16 %v727, %v724
    %v1106 = vpack.c.b16 %v731, %v728
    %v1107 = vpack.c.b16 %v732, %v729
    %v1108 = vpack.c.b16 %v733, %v730
    %v1109 = vpack.c.b16 %v737, %v734
    %v1110 = vpack.c.b16 %v738, %v735
    %v1111 = vpack.c.b16 %v739, %v736
    %v1112 = vpack.c.b16 %v743, %v740
    %v1113 = vpack.c.b16 %v744, %v741
    %v1114 = vpack.c.b16 %v745, %v742
    %v1115 = vpack.c.b16 %v749, %v746
    %v1116 = vpack.c.b16 %v750, %v747
    %v1117 = vpack.c.b16 %v751, %v748
    %v1118 = vpack.c.b16 %v755, %v752
    %v1119 = vpack.c.b16 %v756, %v753
    %v1120 = vpack.c.b16 %v757, %v754
    %v1121 = vpack.c.b16 %v761, %v758
    %v1122 = vpack.c.b16 %v762, %v759
    %v1123 = vpack.c.b16 %v763, %v760
    %v1124 = vpack.c.b16 %v767, %v764
    %v1125 = vpack.c.b16 %v768, %v765
    %v1126 = vpack.c.b16 %v769, %v766
    %v1127 = vpack.c.b16 %v773, %v770
    %v1128 = vpack.c.b16 %v774, %v771
    %v1129 = vpack.c.b16 %v775, %v772
    %v1130 = vpack.c.b16 %v779, %v776
    %v1131 = vpack.c.b16 %v780, %v777
    %v1132 = vpack.c.b16 %v781, %v778
    %v1133 = vpack.c.b16 %v785, %v782
    %v1134 = vpack.c.b16 %v786, %v783
    %v1135 = vpack.c.b16 %v787, %v784
    %v1136 = vpack.c.b16 %v791, %v788
    %v1137 = vpack.c.b16 %v792, %v789
    %v1138 = vpack.c.b16 %v793, %v790
    %v1139 = vpack.c.b16 %v797, %v794
    %v1140 = vpack.c.b16 %v798, %v795
    %v1141 = vpack.c.b16 %v799, %v796
    %v1142 = vpack.c.b16 %v803, %v800
    %v1143 = vpack.c.b16 %v804, %v801
    %v1144 = vpack.c.b16 %v805, %v802
    %v1145 = vpack.c.b16 %v809, %v806
    %v1146 = vpack.c.b16 %v810, %v807
    %v1147 = vpack.c.b16 %v811, %v808
    %v1148 = vpack.c.b16 %v815, %v812
    %v1149 = vpack.c.b16 %v816, %v813
    %v1150 = vpack.c.b16 %v817, %v814
    %v1151 = vpack.c.b16 %v821, %v818
    %v1152 = vpack.c.b16 %v822, %v819
    %v1153 = vpack.c.b16 %v823, %v820
    %v1154 = vpack.c.b16 %v827, %v824
    %v1155 = vpack.c.b16 %v828, %v825
    %v1156 = vpack.c.b16 %v829, %v826
    %v1157 = vpack.c.b16 %v833, %v830
    %v1158 = vpack.c.b16 %v834, %v831
    %v1159 = vpack.c.b16 %v835, %v832
    %v1160 = vpack.c.b16 %v839, %v836
    %v1161 = vpack.c.b16 %v840, %v837
    %v1162 = vpack.c.b16 %v841, %v838
    %v1163 = vpack.c.b16 %v845, %v842
    %v1164 = vpack.c.b16 %v846, %v843
    %v1165 = vpack.c.b16 %v847, %v844
    %v1166 = vpack.c.b16 %v851, %v848
    %v1167 = vpack.c.b16 %v852, %v849
    %v1168 = vpack.c.b16 %v853, %v850
    %v1169 = vpack.c.b16 %v857, %v854
    %v1170 = vpack.c.b16 %v858, %v855
    %v1171 = vpack.c.b16 %v859, %v856
    %v1172 = vpack.c.b16 %v863, %v860
    %v1173 = vpack.c.b16 %v864, %v861
    %v1174 = vpack.c.b16 %v865, %v862
    %v1175 = vpack.c.b16 %v869, %v866
    %v1176 = vpack.c.b16 %v870, %v867
    %v1177 = vpack.c.b16 %v871, %v868
    %v1178 = vpack.c.b16 %v875, %v872
    %v1179 = vpack.c.b16 %v876, %v873
    %v1180 = vpack.c.b16 %v877, %v874
    %v1181 = vpack.c.b16 %v881, %v878
    %v1182 = vpack.c.b16 %v882, %v879
    %v1183 = vpack.c.b16 %v883, %v880
    %v1184 = vpack.c.b16 %v887, %v884
    %v1185 = vpack.c.b16 %v888, %v885
    %v1186 = vpack.c.b16 %v889, %v886
    %v1187 = vpack.c.b16 %v893, %v890
    %v1188 = vpack.c.b16 %v894, %v891
    %v1189 = vpack.c.b16 %v895, %v892
    %v1190 = vpack.c.b16 %v899, %v896
    %v1191 = vpack.c.b16 %v900, %v897
    %v1192 = vpack.c.b16 %v901, %v898
    %v1193 = vpack.c.b16 %v905, %v902
    %v1194 = vpack.c.b16 %v906, %v903
    %v1195 = vpack.c.b16 %v907, %v904
    %v1196 = vpack.c.b16 %v911, %v908
    %v1197 = vpack.c.b16 %v912, %v909
    %v1198 = vpack.c.b16 %v913, %v910
    %v1199 = vpack.c.b16 %v917, %v914
    %v1200 = vpack.c.b16 %v918, %v915
    %v1201 = vpack.c.b16 %v919, %v916
    %v1202 = vpack.c.b16 %v923, %v920
    %v1203 = vpack.c.b16 %v924, %v921
    %v1204 = vpack.c.b16 %v925, %v922
    %v1205 = vpack.c.b16 %v929, %v926
    %v1206 = vpack.c.b16 %v930, %v927
    %v1207 = vpack.c.b16 %v931, %v928
    %v1208 = vpack.c.b16 %v935, %v932
    %v1209 = vpack.c.b16 %v936, %v933
    %v1210 = vpack.c.b16 %v937, %v934
    %v1211 = vpack.c.b16 %v941, %v938
    %v1212 = vpack.c.b16 %v942, %v939
    %v1213 = vpack.c.b16 %v943, %v940
    %v1214 = vpack.c.b16 %v947, %v944
    %v1215 = vpack.c.b16 %v948, %v945
    %v1216 = vpack.c.b16 %v949, %v946
    %v1217 = vpack.c.b16 %v953, %v950
    %v1218 = vpack.c.b16 %v954, %v951
    %v1219 = vpack.c.b16 %v955, %v952
    %v1220 = vpack.c.b16 %v959, %v956
    %v1221 = vpack.c.b16 %v960, %v957
    %v1222 = vpack.c.b16 %v961, %v958
    %v1223 = vpack.c.b16 %v965, %v962
    %v1224 = vpack.c.b16 %v966, %v963
    %v1225 = vpack.c.b16 %v967, %v964
    %v1226 = vpack.c.b16 %v971, %v968
    %v1227 = vpack.c.b16 %v972, %v969
    %v1228 = vpack.c.b16 %v973, %v970
    %v1229 = vpack.c.b16 %v977, %v974
    %v1230 = vpack.c.b16 %v978, %v975
    %v1231 = vpack.c.b16 %v979, %v976
    %v1232 = vpack.c.b16 %v983, %v980
    %v1233 = vpack.c.b16 %v984, %v981
    %v1234 = vpack.c.b16 %v985, %v982
    %v1235 = vpack.c.b16 %v989, %v986
    %v1236 = vpack.c.b16 %v990, %v987
    %v1237 = vpack.c.b16 %v991, %v988
    %v1238 = vpack.c.b16 %v995, %v992
    %v1239 = vpack.c.b16 %v996, %v993
    %v1240 = vpack.c.b16 %v997, %v994
    %v1241 = vpack.c.b16 %v1001, %v998
    %v1242 = vpack.c.b16 %v1002, %v999
    %v1243 = vpack.c.b16 %v1003, %v1000
    %v1244 = vpack.c.b16 %v1007, %v1004
    %v1245 = vpack.c.b16 %v1008, %v1005
    %v1246 = vpack.c.b16 %v1009, %v1006
    %v1247 = vpack.c.b16 %v1013, %v1010
    %v1248 = vpack.c.b16 %v1014, %v1011
    %v1249 = vpack.c.b16 %v1015, %v1012
    %v1250 = vpack.c.b16 %v1019, %v1016
    %v1251 = vpack.c.b16 %v1020, %v1017
    %v1252 = vpack.c.b16 %v1021, %v1018
    %v1253 = vpack.c.b16 %v1025, %v1022
    %v1254 = vpack.c.b16 %v1026, %v1023
    %v1255 = vpack.c.b16 %v1027, %v1024
    %v1256 = vpack.c.b16 %v1031, %v1028
    %v1257 = vpack.c.b16 %v1032, %v1029
    %v1258 = vpack.c.b16 %v1033, %v1030
    %v1259 = vpack.c.b16 %v1037, %v1034
    %v1260 = vpack.c.b16 %v1038, %v1035
    %v1261 = vpack.c.b16 %v1039, %v1036
    %v1262 = vpack.c.b16 %v1043, %v1040
    %v1263 = vpack.c.b16 %v1044, %v1041
    %v1264 = vpack.c.b16 %v1045, %v1042
    %v1265 = vpack.c.b16 %v1049, %v1046
    %v1266 = vpack.c.b16 %v1050, %v1047
    %v1267 = vpack.c.b16 %v1051, %v1048
    %v1268 = vpack.c.b16 %v1055, %v1052
    %v1269 = vpack.c.b16 %v1056, %v1053
    %v1270 = vpack.c.b16 %v1057, %v1054
    %v1271 = vpack.c.b16 %v1061, %v1058
    %v1272 = vpack.c.b16 %v1062, %v1059
    %v1273 = vpack.c.b16 %v1063, %v1060
    %v1274 = vpack.c.b16 %v1067, %v1064
    %v1275 = vpack.c.b16 %v1068, %v1065
    %v1276 = vpack.c.b16 %v1069, %v1066
    %v1277 = vpack.c.b16 %v1073, %v1070
    %v1278 = vpack.c.b16 %v1074, %v1071
    %v1279 = vpack.c.b16 %v1075, %v1072
    %v1280 = vpack.c.b16 %v1079, %v1076
    %v1281 = vpack.c.b16 %v1080, %v1077
    %v1282 = vpack.c.b16 %v1081, %v1078
    %v1283 = vpack.c.b16 %v1085, %v1082
    %v1284 = vpack.c.b16 %v1086, %v1083
    %v1285 = vpack.c.b16 %v1087, %v1084
    %v1286 = vpack.c.b16 %v1091, %v1088
    %v1287 = vpack.c.b16 %v1092, %v1089
    %v1288 = vpack.c.b16 %v1093, %v1090
    %v1289 = vpack.c.b16 %v1097, %v1094
    %v1290 = vpack.c.b16 %v1098, %v1095
    %v1291 = vpack.c.b16 %v1099, %v1096
    %1484 = vmatprep.subr.bf16.mxu0 %v1122
    %1485 = vmatpush1.bf16.msra.mxu0 %v1121
    %1486 = vmatprep.subr.bf16.mxu0 %v1119
    %1487 = vmatpush1.bf16.msra.mxu0 %v1118
    %1488 = vmatprep.subr.bf16.mxu0 %v1116
    %1489 = vmatpush1.bf16.msra.mxu0 %v1115
    %1490 = vmatprep.subr.bf16.mxu0 %v1113
    %1491 = vmatpush1.bf16.msra.mxu0 %v1112
    %1492 = vmatprep.subr.bf16.mxu0 %v1110
    %1493 = vmatpush1.bf16.msra.mxu0 %v1109
    %1494 = vmatprep.subr.bf16.mxu0 %v1107
    %1495 = vmatpush1.bf16.msra.mxu0 %v1106
    %1496 = vmatprep.subr.bf16.mxu0 %v1104
    %1497 = vmatpush1.bf16.msra.mxu0 %v1103
    %1498 = vmatprep.subr.bf16.mxu0 %v1101
    %1499 = vmatpush1.bf16.msra.mxu0 %v1100
    %1500 = vmatprep.subr.bf16.mxu0 %v1146
    %1501 = vmatpush2.bf16.msra.mxu0 %v1145
    %1502 = vmatprep.subr.bf16.mxu0 %v1143
    %1503 = vmatpush2.bf16.msra.mxu0 %v1142
    %1504 = vmatprep.subr.bf16.mxu0 %v1140
    %1505 = vmatpush2.bf16.msra.mxu0 %v1139
    %1506 = vmatprep.subr.bf16.mxu0 %v1137
    %1507 = vmatpush2.bf16.msra.mxu0 %v1136
    %1508 = vmatprep.subr.bf16.mxu0 %v1134
    %1509 = vmatpush2.bf16.msra.mxu0 %v1133
    %1510 = vmatprep.subr.bf16.mxu0 %v1131
    %1511 = vmatpush2.bf16.msra.mxu0 %v1130
    %1512 = vmatprep.subr.bf16.mxu0 %v1128
    %1513 = vmatpush2.bf16.msra.mxu0 %v1127
    %1514 = vmatprep.subr.bf16.mxu0 %v1125
    %1515 = vmatpush2.bf16.msra.mxu0 %v1124
    %1516 = vmatprep.mubr.bf16.mxu0 %v180
    %1517 = vmatmul.mubr.bf16.gmra.mxu0 %v179
    %v1518 = vpop.f32.mrf.mxu0
    %v1519 = vadd.f32 %v448, %v1518
    %v1520 = vpop.f32.mrf.mxu0
    %v1521 = vadd.f32 %v452, %v1520
    %v1522 = vpop.f32.mrf.mxu0
    %v1523 = vpop.f32.mrf.mxu0
    %1524 = vdwg.mxu0
    %1525 = vmatprep.subr.bf16.mxu0 %v1170
    %1526 = vmatpush1.bf16.msra.mxu0 %v1169
    %1527 = vmatprep.subr.bf16.mxu0 %v1167
    %1528 = vmatpush1.bf16.msra.mxu0 %v1166
    %1529 = vmatprep.subr.bf16.mxu0 %v1164
    %1530 = vmatpush1.bf16.msra.mxu0 %v1163
    %1531 = vmatprep.subr.bf16.mxu0 %v1161
    %1532 = vmatpush1.bf16.msra.mxu0 %v1160
    %1533 = vmatprep.subr.bf16.mxu0 %v1158
    %1534 = vmatpush1.bf16.msra.mxu0 %v1157
    %1535 = vmatprep.subr.bf16.mxu0 %v1155
    %1536 = vmatpush1.bf16.msra.mxu0 %v1154
    %1537 = vmatprep.subr.bf16.mxu0 %v1152
    %1538 = vmatpush1.bf16.msra.mxu0 %v1151
    %1539 = vmatprep.subr.bf16.mxu0 %v1149
    %1540 = vmatpush1.bf16.msra.mxu0 %v1148
    %1541 = vmatprep.subr.bf16.mxu0 %v1194
    %1542 = vmatpush2.bf16.msra.mxu0 %v1193
    %1543 = vmatprep.subr.bf16.mxu0 %v1191
    %1544 = vmatpush2.bf16.msra.mxu0 %v1190
    %1545 = vmatprep.subr.bf16.mxu0 %v1188
    %1546 = vmatpush2.bf16.msra.mxu0 %v1187
    %1547 = vmatprep.subr.bf16.mxu0 %v1185
    %1548 = vmatpush2.bf16.msra.mxu0 %v1184
    %1549 = vmatprep.subr.bf16.mxu0 %v1182
    %1550 = vmatpush2.bf16.msra.mxu0 %v1181
    %1551 = vmatprep.subr.bf16.mxu0 %v1179
    %1552 = vmatpush2.bf16.msra.mxu0 %v1178
    %1553 = vmatprep.subr.bf16.mxu0 %v1176
    %1554 = vmatpush2.bf16.msra.mxu0 %v1175
    %1555 = vmatprep.subr.bf16.mxu0 %v1173
    %1556 = vmatpush2.bf16.msra.mxu0 %v1172
    %1557 = vmatprep.mubr.bf16.mxu0 %v182
    %1558 = vmatmul.mubr.bf16.gmra.mxu0 %v181
    %v1559 = vpop.f32.mrf.mxu0
    %v1560 = vadd.f32 %v1519, %v1559
    %v1561 = vpop.f32.mrf.mxu0
    %v1562 = vadd.f32 %v1521, %v1561
    %v1563 = vpop.f32.mrf.mxu0
    %v1564 = vpop.f32.mrf.mxu0
    %1565 = vdwg.mxu0
    %1566 = vmatprep.subr.bf16.mxu0 %v1218
    %1567 = vmatpush1.bf16.msra.mxu0 %v1217
    %1568 = vmatprep.subr.bf16.mxu0 %v1215
    %1569 = vmatpush1.bf16.msra.mxu0 %v1214
    %1570 = vmatprep.subr.bf16.mxu0 %v1212
    %1571 = vmatpush1.bf16.msra.mxu0 %v1211
    %1572 = vmatprep.subr.bf16.mxu0 %v1209
    %1573 = vmatpush1.bf16.msra.mxu0 %v1208
    %1574 = vmatprep.subr.bf16.mxu0 %v1206
    %1575 = vmatpush1.bf16.msra.mxu0 %v1205
    %1576 = vmatprep.subr.bf16.mxu0 %v1203
    %1577 = vmatpush1.bf16.msra.mxu0 %v1202
    %1578 = vmatprep.subr.bf16.mxu0 %v1200
    %1579 = vmatpush1.bf16.msra.mxu0 %v1199
    %1580 = vmatprep.subr.bf16.mxu0 %v1197
    %1581 = vmatpush1.bf16.msra.mxu0 %v1196
    %1582 = vmatprep.subr.bf16.mxu0 %v1242
    %1583 = vmatpush2.bf16.msra.mxu0 %v1241
    %1584 = vmatprep.subr.bf16.mxu0 %v1239
    %1585 = vmatpush2.bf16.msra.mxu0 %v1238
    %1586 = vmatprep.subr.bf16.mxu0 %v1236
    %1587 = vmatpush2.bf16.msra.mxu0 %v1235
    %1588 = vmatprep.subr.bf16.mxu0 %v1233
    %1589 = vmatpush2.bf16.msra.mxu0 %v1232
    %1590 = vmatprep.subr.bf16.mxu0 %v1230
    %1591 = vmatpush2.bf16.msra.mxu0 %v1229
    %1592 = vmatprep.subr.bf16.mxu0 %v1227
    %1593 = vmatpush2.bf16.msra.mxu0 %v1226
    %1594 = vmatprep.subr.bf16.mxu0 %v1224
    %1595 = vmatpush2.bf16.msra.mxu0 %v1223
    %1596 = vmatprep.subr.bf16.mxu0 %v1221
    %1597 = vmatpush2.bf16.msra.mxu0 %v1220
    %1598 = vmatprep.mubr.bf16.mxu0 %v184
    %1599 = vmatmul.mubr.bf16.gmra.mxu0 %v183
    %v1600 = vpop.f32.mrf.mxu0
    %v1601 = vadd.f32 %v1560, %v1600
    %v1602 = vpop.f32.mrf.mxu0
    %v1603 = vadd.f32 %v1562, %v1602
    %v1604 = vpop.f32.mrf.mxu0
    %v1605 = vpop.f32.mrf.mxu0
    %1606 = vdwg.mxu0
    %1607 = vmatprep.subr.bf16.mxu0 %v1266
    %1608 = vmatpush1.bf16.msra.mxu0 %v1265
    %1609 = vmatprep.subr.bf16.mxu0 %v1263
    %1610 = vmatpush1.bf16.msra.mxu0 %v1262
    %1611 = vmatprep.subr.bf16.mxu0 %v1260
    %1612 = vmatpush1.bf16.msra.mxu0 %v1259
    %1613 = vmatprep.subr.bf16.mxu0 %v1257
    %1614 = vmatpush1.bf16.msra.mxu0 %v1256
    %1615 = vmatprep.subr.bf16.mxu0 %v1254
    %1616 = vmatpush1.bf16.msra.mxu0 %v1253
    %1617 = vmatprep.subr.bf16.mxu0 %v1251
    %1618 = vmatpush1.bf16.msra.mxu0 %v1250
    %1619 = vmatprep.subr.bf16.mxu0 %v1248
    %1620 = vmatpush1.bf16.msra.mxu0 %v1247
    %1621 = vmatprep.subr.bf16.mxu0 %v1245
    %1622 = vmatpush1.bf16.msra.mxu0 %v1244
    %1623 = vmatprep.subr.bf16.mxu0 %v1290
    %1624 = vmatpush2.bf16.msra.mxu0 %v1289
    %1625 = vmatprep.subr.bf16.mxu0 %v1287
    %1626 = vmatpush2.bf16.msra.mxu0 %v1286
    %1627 = vmatprep.subr.bf16.mxu0 %v1284
    %1628 = vmatpush2.bf16.msra.mxu0 %v1283
    %1629 = vmatprep.subr.bf16.mxu0 %v1281
    %1630 = vmatpush2.bf16.msra.mxu0 %v1280
    %1631 = vmatprep.subr.bf16.mxu0 %v1278
    %1632 = vmatpush2.bf16.msra.mxu0 %v1277
    %1633 = vmatprep.subr.bf16.mxu0 %v1275
    %1634 = vmatpush2.bf16.msra.mxu0 %v1274
    %1635 = vmatprep.subr.bf16.mxu0 %v1272
    %1636 = vmatpush2.bf16.msra.mxu0 %v1271
    %1637 = vmatprep.subr.bf16.mxu0 %v1269
    %1638 = vmatpush2.bf16.msra.mxu0 %v1268
    %1639 = vmatprep.mubr.bf16.mxu0 %v186
    %1640 = vmatmul.mubr.bf16.gmra.mxu0 %v185
    %v1641 = vpop.f32.mrf.mxu0
    %v1642 = vadd.f32 %v1601, %v1641
    %v1643 = vpop.f32.mrf.mxu0
    %v1644 = vadd.f32 %v1603, %v1643
    %v1645 = vpop.f32.mrf.mxu0
    %v1646 = vpop.f32.mrf.mxu0
    %1647 = vdwg.mxu0
    %1648 = vmatprep.subr.bf16.mxu0 0
    %1649 = vmatpush1.bf16.msra.mxu0 %v1123
    %1650 = vmatprep.subr.bf16.mxu0 0
    %1651 = vmatpush1.bf16.msra.mxu0 %v1120
    %1652 = vmatprep.subr.bf16.mxu0 0
    %1653 = vmatpush1.bf16.msra.mxu0 %v1117
    %1654 = vmatprep.subr.bf16.mxu0 0
    %1655 = vmatpush1.bf16.msra.mxu0 %v1114
    %1656 = vmatprep.subr.bf16.mxu0 0
    %1657 = vmatpush1.bf16.msra.mxu0 %v1111
    %1658 = vmatprep.subr.bf16.mxu0 0
    %1659 = vmatpush1.bf16.msra.mxu0 %v1108
    %1660 = vmatprep.subr.bf16.mxu0 0
    %1661 = vmatpush1.bf16.msra.mxu0 %v1105
    %1662 = vmatprep.subr.bf16.mxu0 0
    %1663 = vmatpush1.bf16.msra.mxu0 %v1102
    %1664 = vmatprep.subr.bf16.mxu0 0
    %1665 = vmatpush2.bf16.msra.mxu0 %v1147
    %1666 = vmatprep.subr.bf16.mxu0 0
    %1667 = vmatpush2.bf16.msra.mxu0 %v1144
    %1668 = vmatprep.subr.bf16.mxu0 0
    %1669 = vmatpush2.bf16.msra.mxu0 %v1141
    %1670 = vmatprep.subr.bf16.mxu0 0
    %1671 = vmatpush2.bf16.msra.mxu0 %v1138
    %1672 = vmatprep.subr.bf16.mxu0 0
    %1673 = vmatpush2.bf16.msra.mxu0 %v1135
    %1674 = vmatprep.subr.bf16.mxu0 0
    %1675 = vmatpush2.bf16.msra.mxu0 %v1132
    %1676 = vmatprep.subr.bf16.mxu0 0
    %1677 = vmatpush2.bf16.msra.mxu0 %v1129
    %1678 = vmatprep.subr.bf16.mxu0 0
    %1679 = vmatpush2.bf16.msra.mxu0 %v1126
    %1680 = vmatprep.mubr.bf16.mxu0 %v180
    %1681 = vmatmul.mubr.bf16.gmra.mxu0 %v179
    %v1682 = vpop.f32.mrf.mxu0
    %v1683 = vadd.f32 %v456, %v1682
    %v1684 = vpop.f32.mrf.mxu0
    %v1685 = vpop.f32.mrf.mxu0
    %v1686 = vpop.f32.mrf.mxu0
    %1687 = vdwg.mxu0
    %1688 = vmatprep.subr.bf16.mxu0 0
    %1689 = vmatpush1.bf16.msra.mxu0 %v1171
    %1690 = vmatprep.subr.bf16.mxu0 0
    %1691 = vmatpush1.bf16.msra.mxu0 %v1168
    %1692 = vmatprep.subr.bf16.mxu0 0
    %1693 = vmatpush1.bf16.msra.mxu0 %v1165
    %1694 = vmatprep.subr.bf16.mxu0 0
    %1695 = vmatpush1.bf16.msra.mxu0 %v1162
    %1696 = vmatprep.subr.bf16.mxu0 0
    %1697 = vmatpush1.bf16.msra.mxu0 %v1159
    %1698 = vmatprep.subr.bf16.mxu0 0
    %1699 = vmatpush1.bf16.msra.mxu0 %v1156
    %1700 = vmatprep.subr.bf16.mxu0 0
    %1701 = vmatpush1.bf16.msra.mxu0 %v1153
    %1702 = vmatprep.subr.bf16.mxu0 0
    %1703 = vmatpush1.bf16.msra.mxu0 %v1150
    %1704 = vmatprep.subr.bf16.mxu0 0
    %1705 = vmatpush2.bf16.msra.mxu0 %v1195
    %1706 = vmatprep.subr.bf16.mxu0 0
    %1707 = vmatpush2.bf16.msra.mxu0 %v1192
    %1708 = vmatprep.subr.bf16.mxu0 0
    %1709 = vmatpush2.bf16.msra.mxu0 %v1189
    %1710 = vmatprep.subr.bf16.mxu0 0
    %1711 = vmatpush2.bf16.msra.mxu0 %v1186
    %1712 = vmatprep.subr.bf16.mxu0 0
    %1713 = vmatpush2.bf16.msra.mxu0 %v1183
    %1714 = vmatprep.subr.bf16.mxu0 0
    %1715 = vmatpush2.bf16.msra.mxu0 %v1180
    %1716 = vmatprep.subr.bf16.mxu0 0
    %1717 = vmatpush2.bf16.msra.mxu0 %v1177
    %1718 = vmatprep.subr.bf16.mxu0 0
    %1719 = vmatpush2.bf16.msra.mxu0 %v1174
    %1720 = vmatprep.mubr.bf16.mxu0 %v182
    %1721 = vmatmul.mubr.bf16.gmra.mxu0 %v181
    %v1722 = vpop.f32.mrf.mxu0
    %v1723 = vadd.f32 %v1683, %v1722
    %v1724 = vpop.f32.mrf.mxu0
    %v1725 = vpop.f32.mrf.mxu0
    %v1726 = vpop.f32.mrf.mxu0
    %1727 = vdwg.mxu0
    %1728 = vmatprep.subr.bf16.mxu0 0
    %1729 = vmatpush1.bf16.msra.mxu0 %v1219
    %1730 = vmatprep.subr.bf16.mxu0 0
    %1731 = vmatpush1.bf16.msra.mxu0 %v1216
    %1732 = vmatprep.subr.bf16.mxu0 0
    %1733 = vmatpush1.bf16.msra.mxu0 %v1213
    %1734 = vmatprep.subr.bf16.mxu0 0
    %1735 = vmatpush1.bf16.msra.mxu0 %v1210
    %1736 = vmatprep.subr.bf16.mxu0 0
    %1737 = vmatpush1.bf16.msra.mxu0 %v1207
    %1738 = vmatprep.subr.bf16.mxu0 0
    %1739 = vmatpush1.bf16.msra.mxu0 %v1204
    %1740 = vmatprep.subr.bf16.mxu0 0
    %1741 = vmatpush1.bf16.msra.mxu0 %v1201
    %1742 = vmatprep.subr.bf16.mxu0 0
    %1743 = vmatpush1.bf16.msra.mxu0 %v1198
    %1744 = vmatprep.subr.bf16.mxu0 0
    %1745 = vmatpush2.bf16.msra.mxu0 %v1243
    %1746 = vmatprep.subr.bf16.mxu0 0
    %1747 = vmatpush2.bf16.msra.mxu0 %v1240
    %1748 = vmatprep.subr.bf16.mxu0 0
    %1749 = vmatpush2.bf16.msra.mxu0 %v1237
    %1750 = vmatprep.subr.bf16.mxu0 0
    %1751 = vmatpush2.bf16.msra.mxu0 %v1234
    %1752 = vmatprep.subr.bf16.mxu0 0
    %1753 = vmatpush2.bf16.msra.mxu0 %v1231
    %1754 = vmatprep.subr.bf16.mxu0 0
    %1755 = vmatpush2.bf16.msra.mxu0 %v1228
    %1756 = vmatprep.subr.bf16.mxu0 0
    %1757 = vmatpush2.bf16.msra.mxu0 %v1225
    %1758 = vmatprep.subr.bf16.mxu0 0
    %1759 = vmatpush2.bf16.msra.mxu0 %v1222
    %1760 = vmatprep.mubr.bf16.mxu0 %v184
    %1761 = vmatmul.mubr.bf16.gmra.mxu0 %v183
    %v1762 = vpop.f32.mrf.mxu0
    %v1763 = vadd.f32 %v1723, %v1762
    %v1764 = vpop.f32.mrf.mxu0
    %v1765 = vpop.f32.mrf.mxu0
    %v1766 = vpop.f32.mrf.mxu0
    %1767 = vdwg.mxu0
    %1768 = vmatprep.subr.bf16.mxu0 0
    %1769 = vmatpush1.bf16.msra.mxu0 %v1267
    %1770 = vmatprep.subr.bf16.mxu0 0
    %1771 = vmatpush1.bf16.msra.mxu0 %v1264
    %1772 = vmatprep.subr.bf16.mxu0 0
    %1773 = vmatpush1.bf16.msra.mxu0 %v1261
    %1774 = vmatprep.subr.bf16.mxu0 0
    %1775 = vmatpush1.bf16.msra.mxu0 %v1258
    %1776 = vmatprep.subr.bf16.mxu0 0
    %1777 = vmatpush1.bf16.msra.mxu0 %v1255
    %1778 = vmatprep.subr.bf16.mxu0 0
    %1779 = vmatpush1.bf16.msra.mxu0 %v1252
    %1780 = vmatprep.subr.bf16.mxu0 0
    %1781 = vmatpush1.bf16.msra.mxu0 %v1249
    %1782 = vmatprep.subr.bf16.mxu0 0
    %1783 = vmatpush1.bf16.msra.mxu0 %v1246
    %1784 = vmatprep.subr.bf16.mxu0 0
    %1785 = vmatpush2.bf16.msra.mxu0 %v1291
    %1786 = vmatprep.subr.bf16.mxu0 0
    %1787 = vmatpush2.bf16.msra.mxu0 %v1288
    %1788 = vmatprep.subr.bf16.mxu0 0
    %1789 = vmatpush2.bf16.msra.mxu0 %v1285
    %1790 = vmatprep.subr.bf16.mxu0 0
    %1791 = vmatpush2.bf16.msra.mxu0 %v1282
    %1792 = vmatprep.subr.bf16.mxu0 0
    %1793 = vmatpush2.bf16.msra.mxu0 %v1279
    %1794 = vmatprep.subr.bf16.mxu0 0
    %1795 = vmatpush2.bf16.msra.mxu0 %v1276
    %1796 = vmatprep.subr.bf16.mxu0 0
    %1797 = vmatpush2.bf16.msra.mxu0 %v1273
    %1798 = vmatprep.subr.bf16.mxu0 0
    %1799 = vmatpush2.bf16.msra.mxu0 %v1270
    %1800 = vmatprep.mubr.bf16.mxu0 %v186
    %1801 = vmatmul.mubr.bf16.gmra.mxu0 %v185
    %v1802 = vpop.f32.mrf.mxu0
    %v1803 = vadd.f32 %v1763, %v1802
    %v1804 = vpop.f32.mrf.mxu0
    %v1805 = vpop.f32.mrf.mxu0
    %v1806 = vpop.f32.mrf.mxu0
    %1807 = vdwg.mxu0
    %v1808 = vmax.f32 %v1642, 0.0
    %v1809 = vmax.f32 %v1644, 0.0
    %v1810 = vmax.f32 %v1803, 0.0
    %v1811 = vpack.c.bf16 %v1808, %v1808
    %v1812 = vpack.c.bf16 %v1809, %v1809
    %v1813 = vpack.c.bf16 %v1810, %v1810
    %v1814 = vld [vmem:[#allocation7] sm:$0xf]
    %v1815 = vld [vmem:[#allocation7 + $0x4] sm:$0xf]
    %v1816 = vld [vmem:[#allocation7 + $0x8] sm:$0xf]
    %v1817 = vld [vmem:[#allocation7 + $0xc] sm:$0xf]
    %v1818 = vld [vmem:[#allocation7 + $0x10] sm:$0xf]
    %v1819 = vld [vmem:[#allocation7 + $0x14] sm:$0xf]
    %v1820 = vld [vmem:[#allocation7 + $0x18] sm:$0xf]
    %v1821 = vld [vmem:[#allocation7 + $0x1c] sm:$0xf]
    %v1822 = vld [vmem:[#allocation7 + $0x20] sm:$0xf]
    %v1823 = vld [vmem:[#allocation7 + $0x24] sm:$0xf]
    %v1824 = vld [vmem:[#allocation7 + $0x28] sm:$0xf]
    %v1825 = vld [vmem:[#allocation7 + $0x2c] sm:$0xf]
    %v1826 = vld [vmem:[#allocation7 + $0x30] sm:$0xf]
    %v1827 = vld [vmem:[#allocation7 + $0x34] sm:$0xf]
    %v1828 = vld [vmem:[#allocation7 + $0x38] sm:$0xf]
    %v1829 = vld [vmem:[#allocation7 + $0x3c] sm:$0xf]
    %v1830 = vld [vmem:[#allocation7 + $0x40] sm:$0xf]
    %v1831 = vld [vmem:[#allocation7 + $0x44] sm:$0xf]
    %v1832 = vld [vmem:[#allocation7 + $0x48] sm:$0xf]
    %v1833 = vld [vmem:[#allocation7 + $0x4c] sm:$0xf]
    %v1834 = vld [vmem:[#allocation7 + $0x50] sm:$0xf]
    %v1835 = vld [vmem:[#allocation7 + $0x54] sm:$0xf]
    %v1836 = vld [vmem:[#allocation7 + $0x58] sm:$0xf]
    %v1837 = vld [vmem:[#allocation7 + $0x5c] sm:$0xf]
    %v1838 = vld [vmem:[#allocation7 + $0x60] sm:$0xf]
    %v1839 = vld [vmem:[#allocation7 + $0x64] sm:$0xf]
    %v1840 = vld [vmem:[#allocation7 + $0x68] sm:$0xf]
    %v1841 = vld [vmem:[#allocation7 + $0x6c] sm:$0xf]
    %v1842 = vld [vmem:[#allocation7 + $0x70] sm:$0xf]
    %v1843 = vld [vmem:[#allocation7 + $0x74] sm:$0xf]
    %v1844 = vld [vmem:[#allocation7 + $0x78] sm:$0xf]
    %v1845 = vld [vmem:[#allocation7 + $0x7c] sm:$0xf]
    %v1846 = vld [vmem:[#allocation7 + $0x80] sm:$0xf]
    %v1847 = vld [vmem:[#allocation7 + $0x84] sm:$0xf]
    %v1848 = vld [vmem:[#allocation7 + $0x88] sm:$0xf]
    %v1849 = vld [vmem:[#allocation7 + $0x8c] sm:$0xf]
    %v1850 = vld [vmem:[#allocation7 + $0x90] sm:$0xf]
    %v1851 = vld [vmem:[#allocation7 + $0x94] sm:$0xf]
    %v1852 = vld [vmem:[#allocation7 + $0x98] sm:$0xf]
    %v1853 = vld [vmem:[#allocation7 + $0x9c] sm:$0xf]
    %v1854 = vld [vmem:[#allocation7 + $0xa0] sm:$0xf]
    %v1855 = vld [vmem:[#allocation7 + $0xa4] sm:$0xf]
    %v1856 = vld [vmem:[#allocation7 + $0xa8] sm:$0xf]
    %v1857 = vld [vmem:[#allocation7 + $0xac] sm:$0xf]
    %v1858 = vld [vmem:[#allocation7 + $0xb0] sm:$0xf]
    %v1859 = vld [vmem:[#allocation7 + $0xb4] sm:$0xf]
    %v1860 = vld [vmem:[#allocation7 + $0xb8] sm:$0xf]
    %v1861 = vld [vmem:[#allocation7 + $0xbc] sm:$0xf]
    %v1862 = vld [vmem:[%s4] sm:$0x1]
    %v1864 = vlaneseq
    %v1865 = vshrl.u32 %v1864, 7
    %v1866 = vsub.s32 0, %v1865
    %v1867 = vrot.slane %v1862, %v1866
    %v1917 = vunpack.c.l.b16 %v1814
    %v1918 = vunpack.c.l.b16 %v1815
    %v1919 = vunpack.c.l.b16 %v1816
    %v1920 = vunpack.c.l.b16 %v1817
    %v1921 = vunpack.c.l.b16 %v1818
    %v1922 = vunpack.c.l.b16 %v1819
    %v1923 = vunpack.c.l.b16 %v1820
    %v1924 = vunpack.c.l.b16 %v1821
    %v1925 = vunpack.c.l.b16 %v1822
    %v1926 = vunpack.c.l.b16 %v1823
    %v1927 = vunpack.c.l.b16 %v1824
    %v1928 = vunpack.c.l.b16 %v1825
    %v1929 = vunpack.c.l.b16 %v1826
    %v1930 = vunpack.c.l.b16 %v1827
    %v1931 = vunpack.c.l.b16 %v1828
    %v1932 = vunpack.c.l.b16 %v1829
    %v1933 = vunpack.c.l.b16 %v1830
    %v1934 = vunpack.c.l.b16 %v1831
    %v1935 = vunpack.c.l.b16 %v1832
    %v1936 = vunpack.c.l.b16 %v1833
    %v1937 = vunpack.c.l.b16 %v1834
    %v1938 = vunpack.c.l.b16 %v1835
    %v1939 = vunpack.c.l.b16 %v1836
    %v1940 = vunpack.c.l.b16 %v1837
    %v1941 = vunpack.c.l.b16 %v1838
    %v1942 = vunpack.c.l.b16 %v1839
    %v1943 = vunpack.c.l.b16 %v1840
    %v1944 = vunpack.c.l.b16 %v1841
    %v1945 = vunpack.c.l.b16 %v1842
    %v1946 = vunpack.c.l.b16 %v1843
    %v1947 = vunpack.c.l.b16 %v1844
    %v1948 = vunpack.c.l.b16 %v1845
    %v1949 = vunpack.c.l.b16 %v1846
    %v1950 = vunpack.c.l.b16 %v1847
    %v1951 = vunpack.c.l.b16 %v1848
    %v1952 = vunpack.c.l.b16 %v1849
    %v1953 = vunpack.c.l.b16 %v1850
    %v1954 = vunpack.c.l.b16 %v1851
    %v1955 = vunpack.c.l.b16 %v1852
    %v1956 = vunpack.c.l.b16 %v1853
    %v1957 = vunpack.c.l.b16 %v1854
    %v1958 = vunpack.c.l.b16 %v1855
    %v1959 = vunpack.c.l.b16 %v1856
    %v1960 = vunpack.c.l.b16 %v1857
    %v1961 = vunpack.c.l.b16 %v1858
    %v1962 = vunpack.c.l.b16 %v1859
    %v1963 = vunpack.c.l.b16 %v1860
    %v1964 = vunpack.c.l.b16 %v1861
    %v1965 = vpack.c.b16 %v1918, %v1917
    %v1966 = vpack.c.b16 %v1920, %v1919
    %v1967 = vpack.c.b16 %v1922, %v1921
    %v1968 = vpack.c.b16 %v1924, %v1923
    %v1969 = vpack.c.b16 %v1926, %v1925
    %v1970 = vpack.c.b16 %v1928, %v1927
    %v1971 = vpack.c.b16 %v1930, %v1929
    %v1972 = vpack.c.b16 %v1932, %v1931
    %v1973 = vpack.c.b16 %v1934, %v1933
    %v1974 = vpack.c.b16 %v1936, %v1935
    %v1975 = vpack.c.b16 %v1938, %v1937
    %v1976 = vpack.c.b16 %v1940, %v1939
    %v1977 = vpack.c.b16 %v1942, %v1941
    %v1978 = vpack.c.b16 %v1944, %v1943
    %v1979 = vpack.c.b16 %v1946, %v1945
    %v1980 = vpack.c.b16 %v1948, %v1947
    %v1981 = vpack.c.b16 %v1950, %v1949
    %v1982 = vpack.c.b16 %v1952, %v1951
    %v1983 = vpack.c.b16 %v1954, %v1953
    %v1984 = vpack.c.b16 %v1956, %v1955
    %v1985 = vpack.c.b16 %v1958, %v1957
    %v1986 = vpack.c.b16 %v1960, %v1959
    %v1987 = vpack.c.b16 %v1962, %v1961
    %v1988 = vpack.c.b16 %v1964, %v1963
    %2013 = vmatprep.subr.bf16.mxu0 0
    %2014 = vmatpush1.bf16.msra.mxu0 %v1972
    %2015 = vmatprep.subr.bf16.mxu0 0
    %2016 = vmatpush1.bf16.msra.mxu0 %v1971
    %2017 = vmatprep.subr.bf16.mxu0 0
    %2018 = vmatpush1.bf16.msra.mxu0 %v1970
    %2019 = vmatprep.subr.bf16.mxu0 0
    %2020 = vmatpush1.bf16.msra.mxu0 %v1969
    %2021 = vmatprep.subr.bf16.mxu0 0
    %2022 = vmatpush1.bf16.msra.mxu0 %v1968
    %2023 = vmatprep.subr.bf16.mxu0 0
    %2024 = vmatpush1.bf16.msra.mxu0 %v1967
    %2025 = vmatprep.subr.bf16.mxu0 0
    %2026 = vmatpush1.bf16.msra.mxu0 %v1966
    %2027 = vmatprep.subr.bf16.mxu0 0
    %2028 = vmatpush1.bf16.msra.mxu0 %v1965
    %2029 = vmatprep.subr.bf16.mxu0 0
    %2030 = vmatpush2.bf16.msra.mxu0 %v1980
    %2031 = vmatprep.subr.bf16.mxu0 0
    %2032 = vmatpush2.bf16.msra.mxu0 %v1979
    %2033 = vmatprep.subr.bf16.mxu0 0
    %2034 = vmatpush2.bf16.msra.mxu0 %v1978
    %2035 = vmatprep.subr.bf16.mxu0 0
    %2036 = vmatpush2.bf16.msra.mxu0 %v1977
    %2037 = vmatprep.subr.bf16.mxu0 0
    %2038 = vmatpush2.bf16.msra.mxu0 %v1976
    %2039 = vmatprep.subr.bf16.mxu0 0
    %2040 = vmatpush2.bf16.msra.mxu0 %v1975
    %2041 = vmatprep.subr.bf16.mxu0 0
    %2042 = vmatpush2.bf16.msra.mxu0 %v1974
    %2043 = vmatprep.subr.bf16.mxu0 0
    %2044 = vmatpush2.bf16.msra.mxu0 %v1973
    %2045 = vmatprep.mubr.bf16.mxu0 %v1812
    %2046 = vmatmul.mubr.bf16.gmra.mxu0 %v1811
    %v2047 = vpop.f32.mrf.mxu0
    %v2048 = vadd.f32 %v1867, %v2047
    %v2049 = vpop.f32.mrf.mxu0
    %v2050 = vpop.f32.mrf.mxu0
    %v2051 = vpop.f32.mrf.mxu0
    %2052 = vdwg.mxu0
    %2053 = vmatprep.subr.bf16.mxu0 0
    %2054 = vmatpush1.bf16.msra.mxu0 %v1988
    %2055 = vmatprep.subr.bf16.mxu0 0
    %2056 = vmatpush1.bf16.msra.mxu0 %v1987
    %2057 = vmatprep.subr.bf16.mxu0 0
    %2058 = vmatpush1.bf16.msra.mxu0 %v1986
    %2059 = vmatprep.subr.bf16.mxu0 0
    %2060 = vmatpush1.bf16.msra.mxu0 %v1985
    %2061 = vmatprep.subr.bf16.mxu0 0
    %2062 = vmatpush1.bf16.msra.mxu0 %v1984
    %2063 = vmatprep.subr.bf16.mxu0 0
    %2064 = vmatpush1.bf16.msra.mxu0 %v1983
    %2065 = vmatprep.subr.bf16.mxu0 0
    %2066 = vmatpush1.bf16.msra.mxu0 %v1982
    %2067 = vmatprep.subr.bf16.mxu0 0
    %2068 = vmatpush1.bf16.msra.mxu0 %v1981
    %2069 = vmatprep.subr.bf16.mxu0 0
    %2070 = vmatpush2.bf16.msra.mxu0 0
    %2071 = vmatprep.subr.bf16.mxu0 0
    %2072 = vmatpush2.bf16.msra.mxu0 0
    %2073 = vmatprep.subr.bf16.mxu0 0
    %2074 = vmatpush2.bf16.msra.mxu0 0
    %2075 = vmatprep.subr.bf16.mxu0 0
    %2076 = vmatpush2.bf16.msra.mxu0 0
    %2077 = vmatprep.subr.bf16.mxu0 0
    %2078 = vmatpush2.bf16.msra.mxu0 0
    %2079 = vmatprep.subr.bf16.mxu0 0
    %2080 = vmatpush2.bf16.msra.mxu0 0
    %2081 = vmatprep.subr.bf16.mxu0 0
    %2082 = vmatpush2.bf16.msra.mxu0 0
    %2083 = vmatprep.subr.bf16.mxu0 0
    %2084 = vmatpush2.bf16.msra.mxu0 0
    %2085 = vmatprep.mubr.bf16.mxu0 0
    %2086 = vmatmul.mubr.bf16.gmra.mxu0 %v1813
    %v2087 = vpop.f32.mrf.mxu0
    %v2088 = vadd.f32 %v2048, %v2087
    %v2089 = vpop.f32.mrf.mxu0
    %v2090 = vpop.f32.mrf.mxu0
    %v2091 = vpop.f32.mrf.mxu0
    %2092 = vdwg.mxu0
    %v2093 = vmax.f32 %v2088, 0.0
    %v2094 = vpack.c.bf16 %v2093, %v2093
    %v2095 = vld [vmem:[#allocation8] sm:$0xf]
    %v2096 = vld [vmem:[#allocation8 + $0x4] sm:$0xf]
    %v2097 = vld [vmem:[#allocation8 + $0x8] sm:$0xf]
    %v2098 = vld [vmem:[#allocation8 + $0xc] sm:$0xf]
    %v2099 = vld [vmem:[#allocation8 + $0x10] sm:$0xf]
    %v2100 = vld [vmem:[#allocation8 + $0x14] sm:$0xf]
    %v2101 = vld [vmem:[#allocation8 + $0x18] sm:$0xf]
    %v2102 = vld [vmem:[#allocation8 + $0x1c] sm:$0xf]
    %v2103 = vld [vmem:[#allocation8 + $0x20] sm:$0xf]
    %v2104 = vld [vmem:[#allocation8 + $0x24] sm:$0xf]
    %v2105 = vld [vmem:[#allocation8 + $0x28] sm:$0xf]
    %v2106 = vld [vmem:[#allocation8 + $0x2c] sm:$0xf]
    %v2107 = vld [vmem:[#allocation8 + $0x30] sm:$0xf]
    %v2108 = vld [vmem:[#allocation8 + $0x34] sm:$0xf]
    %v2109 = vld [vmem:[#allocation8 + $0x38] sm:$0xf]
    %v2110 = vld [vmem:[#allocation8 + $0x3c] sm:$0xf]
    %v2111 = vld [vmem:[%s6] sm:$0x1]
    %v2113 = vlaneseq
    %v2114 = vshrl.u32 %v2113, 7
    %v2115 = vsub.s32 0, %v2114
    %v2116 = vrot.slane %v2111, %v2115
    %v2134 = vunpack.c.l.b16 %v2095
    %v2135 = vunpack.c.l.b16 %v2096
    %v2136 = vunpack.c.l.b16 %v2097
    %v2137 = vunpack.c.l.b16 %v2098
    %v2138 = vunpack.c.l.b16 %v2099
    %v2139 = vunpack.c.l.b16 %v2100
    %v2140 = vunpack.c.l.b16 %v2101
    %v2141 = vunpack.c.l.b16 %v2102
    %v2142 = vunpack.c.l.b16 %v2103
    %v2143 = vunpack.c.l.b16 %v2104
    %v2144 = vunpack.c.l.b16 %v2105
    %v2145 = vunpack.c.l.b16 %v2106
    %v2146 = vunpack.c.l.b16 %v2107
    %v2147 = vunpack.c.l.b16 %v2108
    %v2148 = vunpack.c.l.b16 %v2109
    %v2149 = vunpack.c.l.b16 %v2110
    %v2150 = vpack.c.b16 %v2135, %v2134
    %v2151 = vpack.c.b16 %v2137, %v2136
    %v2152 = vpack.c.b16 %v2139, %v2138
    %v2153 = vpack.c.b16 %v2141, %v2140
    %v2154 = vpack.c.b16 %v2143, %v2142
    %v2155 = vpack.c.b16 %v2145, %v2144
    %v2156 = vpack.c.b16 %v2147, %v2146
    %v2157 = vpack.c.b16 %v2149, %v2148
    %2166 = vmatprep.subr.bf16.mxu0 0
    %2167 = vmatpush1.bf16.msra.mxu0 %v2157
    %2168 = vmatprep.subr.bf16.mxu0 0
    %2169 = vmatpush1.bf16.msra.mxu0 %v2156
    %2170 = vmatprep.subr.bf16.mxu0 0
    %2171 = vmatpush1.bf16.msra.mxu0 %v2155
    %2172 = vmatprep.subr.bf16.mxu0 0
    %2173 = vmatpush1.bf16.msra.mxu0 %v2154
    %2174 = vmatprep.subr.bf16.mxu0 0
    %2175 = vmatpush1.bf16.msra.mxu0 %v2153
    %2176 = vmatprep.subr.bf16.mxu0 0
    %2177 = vmatpush1.bf16.msra.mxu0 %v2152
    %2178 = vmatprep.subr.bf16.mxu0 0
    %2179 = vmatpush1.bf16.msra.mxu0 %v2151
    %2180 = vmatprep.subr.bf16.mxu0 0
    %2181 = vmatpush1.bf16.msra.mxu0 %v2150
    %2182 = vmatprep.subr.bf16.mxu0 0
    %2183 = vmatpush2.bf16.msra.mxu0 0
    %2184 = vmatprep.subr.bf16.mxu0 0
    %2185 = vmatpush2.bf16.msra.mxu0 0
    %2186 = vmatprep.subr.bf16.mxu0 0
    %2187 = vmatpush2.bf16.msra.mxu0 0
    %2188 = vmatprep.subr.bf16.mxu0 0
    %2189 = vmatpush2.bf16.msra.mxu0 0
    %2190 = vmatprep.subr.bf16.mxu0 0
    %2191 = vmatpush2.bf16.msra.mxu0 0
    %2192 = vmatprep.subr.bf16.mxu0 0
    %2193 = vmatpush2.bf16.msra.mxu0 0
    %2194 = vmatprep.subr.bf16.mxu0 0
    %2195 = vmatpush2.bf16.msra.mxu0 0
    %2196 = vmatprep.subr.bf16.mxu0 0
    %2197 = vmatpush2.bf16.msra.mxu0 0
    %2198 = vmatprep.mubr.bf16.mxu0 0
    %2199 = vmatmul.mubr.bf16.gmra.mxu0 %v2094
    %v2200 = vpop.f32.mrf.mxu0
    %v2201 = vadd.f32 %v2116, %v2200
    %v2202 = vpop.f32.mrf.mxu0
    %v2203 = vpop.f32.mrf.mxu0
    %v2204 = vpop.f32.mrf.mxu0
    %2205 = vdwg.mxu0
    %2206 = vst [vmem:[#allocation10] sm:$0xff] %v2201
    // Predicated region
    $region46: #{tpu_custom_call.1} parent=1 // pred_check
      _
    $region47: #{tpu_custom_call.1} parent=1 // pred_check_branch
      %2208 = sbr.rel (0) target = $region49
    $region48: #{tpu_custom_call.1} parent=1 // pred_region
      %s2210 = ssub.s32 128, 32
      %2211 = vsyncadd [#allocation4], %s2210
      %s2212 = sshll.u32 [#allocation10], 4
      %s2213 = int_to_ptr.vmem [resolvable:$true] %s2212
      %2218 = dma.vmem_to_hbm [thread:$0]  %s2213, 32, %s7, [#allocation4], 32, 32, 2
    $region49: #{tpu_custom_call.1} parent=1 // pred_fallthru
      _
    // Predicated region
    $region50: #{tpu_custom_call.1} parent=1 // pred_check
      _
    $region51: #{tpu_custom_call.1} parent=1 // pred_check_branch
      %2220 = sbr.rel (0) target = $region53
    $region52: #{tpu_custom_call.1} parent=1 // pred_region
      %2221 = dma.done [#allocation4], 128
    $region53: #{tpu_custom_call.1} parent=1 // pred_fallthru
      _
    %2222 = vsyncpa [#allocation3], 1
    %2223 = vsyncpa [#allocation6], 1
    %2224 = vsyncpa [#allocation9], 1
    %2225 = vsyncpa [#allocation4], 1

</llo_original>
